<compile_context>
chip_gen: v6e
topology: v6e:2x2x1
jax: 0.10.0
libtpu: 0.0.40
codegen_flags: <defaults>
</compile_context>

<pallas_src>
import functools

import jax
import jax.numpy as jnp
from jax.experimental import pallas as pl
from jax.experimental.pallas import tpu as pltpu


# ---------------------------------------------------------------------------
# helpers
# ---------------------------------------------------------------------------

def _round_up(x, m):
    return ((x + m - 1) // m) * m


def _pad_and_tile(m):
    """Pad M to a multiple of 128 only; pick the largest tile in {512,256,128}
    that divides the padded M (no more rounding M up to 512)."""
    mp = _round_up(m, 128)
    for tm in (512, 256, 128):
        if mp % tm == 0:
            return mp, tm
    return mp, 128   # unreachable (mp is a multiple of 128)


def _pad_last(x, mp):
    pad = mp - x.shape[-1]
    if pad == 0:
        return x
    cfg = [(0, 0)] * (x.ndim - 1) + [(0, pad)]
    return jnp.pad(x, cfg)


def _image_group(n, lpp, target=512):
    """Smallest divisor B of n such that B*lpp >= target lanes (else n)."""
    for b in range(1, n + 1):
        if n % b == 0 and b * lpp >= target:
            return b
    return n


# ---------------------------------------------------------------------------
# Pallas kernels
# ---------------------------------------------------------------------------

def _conv_lrelu_kernel(w_ref, x_ref, o_ref, *, slope):
    """y = W @ patches (bf16 operands, f32 acc), LeakyReLU."""
    y = jnp.dot(w_ref[...], x_ref[...], preferred_element_type=jnp.float32)
    o_ref[...] = jnp.where(y > 0, y, slope * y).astype(o_ref.dtype)


def _conv_bn_lrelu_kernel(w_ref, g_ref, b_ref, x_ref, o_ref,
                          ycache_ref, sum_ref, sq_ref, scale_ref, shift_ref,
                          *, count, eps, slope):
    """Fused conv-as-matmul + BatchNorm (global batch stats) + LeakyReLU.

    grid = (2, nt):
      phase 0: y = W @ patches (bf16 MXU), cache y in VMEM, accumulate stats
               (zero-padded columns contribute exactly 0).
      phase 1: (first tile) fold stats into scale/shift once; then per tile
               read the cached y, normalize and write.  No recompute, and the
               patches DMA is pinned to block 0 during phase 1.
    """
    ph = pl.program_id(0)
    t = pl.program_id(1)

    @pl.when(jnp.logical_and(ph == 0, t == 0))
    def _():
        sum_ref[...] = jnp.zeros_like(sum_ref)
        sq_ref[...] = jnp.zeros_like(sq_ref)

    @pl.when(ph == 0)
    def _():
        y = jnp.dot(w_ref[...], x_ref[...], preferred_element_type=jnp.float32)
        ycache_ref[t] = y
        sum_ref[...] += jnp.sum(y, axis=1, keepdims=True)
        sq_ref[...] += jnp.sum(y * y, axis=1, keepdims=True)

    @pl.when(jnp.logical_and(ph == 1, t == 0))
    def _():
        inv = 1.0 / count
        mean = sum_ref[...] * inv
        # NOTE: E[y^2]-E[y]^2 in f32 (clamped); a two-pass/Welford update would
        # be closer to PyTorch for very large activations.
        var = jnp.maximum(sq_ref[...] * inv - mean * mean, 0.0)
        sc = g_ref[...] * jax.lax.rsqrt(var + eps)
        scale_ref[...] = sc
        shift_ref[...] = b_ref[...] - mean * sc

    @pl.when(ph == 1)
    def _():
        yn = ycache_ref[t] * scale_ref[...] + shift_ref[...]
        o_ref[...] = jnp.where(yn > 0, yn, slope * yn).astype(o_ref.dtype)


def _conv3x3_bn_lrelu_kernel(w_ref, g_ref, b_ref, m_ref, x_ref, o_ref,
                             ycache_ref, sum_ref, sq_ref, scale_ref, shift_ref,
                             *, shifts, count, eps, slope):
    """3x3 stride-1 pad-1 conv + BatchNorm (global stats) + LeakyReLU.

    One bf16 matmul per block: Z = Wstack @ x with Wstack = (9*cout, cin);
    the conv result is y = sum_tap roll(Z[tap*cout:(tap+1)*cout], -shift_tap)
    (rolls commute with the contraction), so no im2col duplication and no
    per-tap MXU push/drain.  x is a group of spatially zero-padded, flattened
    images (cin, B*lpp); interior output positions only ever read in-bounds
    data of their own image after the rolls; everything else is masked out of
    the stats and cropped on host.
    grid = (2, nb): phase 0 = conv + cache + stats, phase 1 = normalize+write.
    """
    ph = pl.program_id(0)
    i = pl.program_id(1)

    @pl.when(jnp.logical_and(ph == 0, i == 0))
    def _():
        sum_ref[...] = jnp.zeros_like(sum_ref)
        sq_ref[...] = jnp.zeros_like(sq_ref)

    @pl.when(ph == 0)
    def _():
        x = x_ref[...]                                            # (cin, bl) bf16
        z = jnp.dot(w_ref[...], x, preferred_element_type=jnp.float32)
        cout = o_ref.shape[0]
        bl = x.shape[1]
        y = jnp.zeros((cout, bl), jnp.float32)
        for t, s in enumerate(shifts):                            # 9 static taps
            zt = z[t * cout:(t + 1) * cout, :]
            y = y + (zt if s == 0 else pltpu.roll(zt, (-s) % bl, 1))
        ycache_ref[i] = y
        ym = y * m_ref[...]                                       # mask padding
        sum_ref[...] += jnp.sum(ym, axis=1, keepdims=True)
        sq_ref[...] += jnp.sum(ym * ym, axis=1, keepdims=True)

    @pl.when(jnp.logical_and(ph == 1, i == 0))
    def _():
        inv = 1.0 / count
        mean = sum_ref[...] * inv
        var = jnp.maximum(sq_ref[...] * inv - mean * mean, 0.0)
        sc = g_ref[...] * jax.lax.rsqrt(var + eps)
        scale_ref[...] = sc
        shift_ref[...] = b_ref[...] - mean * sc

    @pl.when(ph == 1)
    def _():
        yn = ycache_ref[i] * scale_ref[...] + shift_ref[...]
        o_ref[...] = jnp.where(yn > 0, yn, slope * yn).astype(o_ref.dtype)


def _final_conv_sigmoid_kernel(w_ref, x_ref, f_ref, c_ref, *, shifts):
    """Final 2x2 stride-1 valid conv as one bf16 matmul (4 taps stacked along
    the output rows) + sigmoid (EUP reciprocal).  Outputs are lane-dense."""
    z = jnp.dot(w_ref[...], x_ref[...], preferred_element_type=jnp.float32)
    nz = f_ref.shape[0]
    mp = z.shape[1]
    y = jnp.zeros((nz, mp), jnp.float32)
    for t, s in enumerate(shifts):
        zt = z[t * nz:(t + 1) * nz, :]
        y = y + (zt if s == 0 else pltpu.roll(zt, (-s) % mp, 1))
    f_ref[...] = y
    sig = pl.reciprocal(1.0 + jnp.exp(-y), approx=True)
    c_ref[...] = jnp.clip(sig, 0.0, 1.0)


# ---------------------------------------------------------------------------
# layer wrappers (host glue: layout plumbing only, no heavy compute)
# ---------------------------------------------------------------------------

def conv2x2_s2_layer(a, w, bn=None, *, slope=0.2, eps=1e-5):
    """2x2 stride-2 conv (no bias) [+ BN] + LeakyReLU.

    a: (Cin, N, H, W) bf16, w: (Cout, Cin, 2, 2) f32.
    Returns (Cout, N, H/2, W/2) bf16.
    """
    cin, n, h, wd = a.shape
    cout = w.shape[0]
    ho, wo = h // 2, wd // 2
    m = n * ho * wo

    # pure space-to-depth: non-overlapping patches, rows ordered (c, kh, kw)
    std = a.reshape(cin, n, ho, 2, wo, 2).transpose(0, 3, 5, 1, 2, 4)
    patches = std.reshape(cin * 4, m)
    mp, tm = _pad_and_tile(m)
    nt = mp // tm
    patches = _pad_last(patches, mp).astype(jnp.bfloat16)
    w_mat = w.reshape(cout, cin * 4).astype(jnp.bfloat16)
    # NOTE: for production-scale configs, size the y-cache scratch / tm against
    # v7x's 64 MiB VMEM via pltpu.CompilerParams(vmem_limit_bytes=...); the
    # demo working set is a few KB.

    if bn is None:
        y = pl.pallas_call(
            functools.partial(_conv_lrelu_kernel, slope=slope),
            out_shape=jax.ShapeDtypeStruct((cout, mp), jnp.bfloat16),
            grid=(nt,),
            in_specs=[pl.BlockSpec((cout, cin * 4), lambda t: (0, 0)),
                      pl.BlockSpec((cin * 4, tm), lambda t: (0, t))],
            out_specs=pl.BlockSpec((cout, tm), lambda t: (0, t)),
            compiler_params=pltpu.CompilerParams(
                dimension_semantics=("parallel",)),
        )(w_mat, patches)
    else:
        gamma = bn["gamma"].reshape(cout, 1).astype(jnp.float32)
        beta = bn["beta"].reshape(cout, 1).astype(jnp.float32)
        y = pl.pallas_call(
            functools.partial(_conv_bn_lrelu_kernel,
                              count=float(m), eps=eps, slope=slope),
            out_shape=jax.ShapeDtypeStruct((cout, mp), jnp.bfloat16),
            grid=(2, nt),
            in_specs=[pl.BlockSpec((cout, cin * 4), lambda p, t: (0, 0)),
                      pl.BlockSpec((cout, 1), lambda p, t: (0, 0)),
                      pl.BlockSpec((cout, 1), lambda p, t: (0, 0)),
                      # phase 1 never reads patches -> pin its DMA to block 0
                      pl.BlockSpec((cin * 4, tm), lambda p, t: (0, t * (1 - p)))],
            # phase 0 keeps output block 0 resident (never written);
            # phase 1 writes each tile exactly once.
            out_specs=pl.BlockSpec((cout, tm), lambda p, t: (0, p * t)),
            scratch_shapes=[pltpu.VMEM((nt, cout, tm), jnp.float32),  # y cache
                            pltpu.VMEM((cout, 1), jnp.float32),       # sum
                            pltpu.VMEM((cout, 1), jnp.float32),       # sumsq
                            pltpu.VMEM((cout, 1), jnp.float32),       # scale
                            pltpu.VMEM((cout, 1), jnp.float32)],      # shift
            compiler_params=pltpu.CompilerParams(
                dimension_semantics=("arbitrary", "arbitrary")),
        )(w_mat, gamma, beta, patches)

    return y[:, :m].reshape(cout, n, ho, wo)


def conv3x3_bn_lrelu_layer(a, w, gamma, beta, *, slope=0.2, eps=1e-5):
    """3x3 stride-1 pad-1 conv + BN + LeakyReLU (extra layers).

    a: (C, N, H, W) bf16, w: (C, C, 3, 3) f32.  Returns (C, N, H, W) bf16.
    """
    cin, n, h, wd = a.shape
    cout = w.shape[0]
    wp = wd + 2
    lp = (h + 2) * wp
    lpp = _round_up(lp, 128)

    xp = jnp.pad(a, ((0, 0), (0, 0), (1, 1), (1, 1))).reshape(cin, n, lp)
    xp = _pad_last(xp, lpp).reshape(cin, n * lpp).astype(jnp.bfloat16)

    # taps stacked along the OUTPUT rows: Wstack[(kh*3+kw)*cout + o, c]
    wstk = jnp.transpose(w, (2, 3, 0, 1)).reshape(9 * cout, cin)
    wstk = wstk.astype(jnp.bfloat16)

    mask1 = jnp.pad(jnp.ones((h, wd), jnp.float32), ((1, 1), (1, 1)))
    mask1 = _pad_last(mask1.reshape(1, lp), lpp)            # (1, lpp)
    mask = jnp.tile(mask1, (1, n))                          # (1, n*lpp)

    shifts = tuple((dh - 1) * wp + (dw - 1) for dh in range(3) for dw in range(3))

    b_img = _image_group(n, lpp, target=512)                # >=512 lanes/block
    nb = n // b_img
    bl = b_img * lpp

    gamma = gamma.reshape(cout, 1).astype(jnp.float32)
    beta = beta.reshape(cout, 1).astype(jnp.float32)

    o = pl.pallas_call(
        functools.partial(_conv3x3_bn_lrelu_kernel, shifts=shifts,
                          count=float(n * h * wd), eps=eps, slope=slope),
        out_shape=jax.ShapeDtypeStruct((cout, n * lpp), jnp.bfloat16),
        grid=(2, nb),
        in_specs=[pl.BlockSpec((9 * cout, cin), lambda p, i: (0, 0)),
                  pl.BlockSpec((cout, 1), lambda p, i: (0, 0)),
                  pl.BlockSpec((cout, 1), lambda p, i: (0, 0)),
                  pl.BlockSpec((1, bl), lambda p, i: (0, i * (1 - p))),
                  pl.BlockSpec((cin, bl), lambda p, i: (0, i * (1 - p)))],
        out_specs=pl.BlockSpec((cout, bl), lambda p, i: (0, p * i)),
        scratch_shapes=[pltpu.VMEM((nb, cout, bl), jnp.float32),  # y cache
                        pltpu.VMEM((cout, 1), jnp.float32),       # sum
                        pltpu.VMEM((cout, 1), jnp.float32),       # sumsq
                        pltpu.VMEM((cout, 1), jnp.float32),       # scale
                        pltpu.VMEM((cout, 1), jnp.float32)],      # shift
        compiler_params=pltpu.CompilerParams(
            dimension_semantics=("arbitrary", "arbitrary")),
    )(wstk, gamma, beta, mask, xp)

    o = o.reshape(cout, n, lpp)[:, :, :lp].reshape(cout, n, h + 2, wp)
    return o[:, :, 1:h + 1, 1:wd + 1]


def final_conv_sigmoid_layer(a, w):
    """Final 2x2 stride-1 valid conv (features) + sigmoid (classifier).

    a: (Cin, N, H, W) bf16, w: (nz, Cin, 2, 2) f32.
    Returns classifier (N*nz*(H-1)*(W-1),) f32 and features (N, nz, H-1, W-1) f32.
    """
    cin, n, h, wd = a.shape
    nz = w.shape[0]
    m = n * h * wd
    mp = _round_up(m, 128)
    xf = _pad_last(a.reshape(cin, m), mp).astype(jnp.bfloat16)
    wstk = jnp.transpose(w, (2, 3, 0, 1)).reshape(4 * nz, cin).astype(jnp.bfloat16)
    shifts = tuple(dh * wd + dw for dh in range(2) for dw in range(2))

    feat, cls = pl.pallas_call(
        functools.partial(_final_conv_sigmoid_kernel, shifts=shifts),
        out_shape=(jax.ShapeDtypeStruct((nz, mp), jnp.float32),
                   jax.ShapeDtypeStruct((nz, mp), jnp.float32)),
        grid=(1,),
        in_specs=[pl.BlockSpec((4 * nz, cin), lambda i: (0, 0)),
                  pl.BlockSpec((cin, mp), lambda i: (0, 0))],
        out_specs=(pl.BlockSpec((nz, mp), lambda i: (0, 0)),
                   pl.BlockSpec((nz, mp), lambda i: (0, 0))),
    )(wstk, xf)

    feat = feat[:, :m].reshape(nz, n, h, wd)[:, :, :h - 1, :wd - 1]
    cls = cls[:, :m].reshape(nz, n, h, wd)[:, :, :h - 1, :wd - 1]
    features = jnp.transpose(feat, (1, 0, 2, 3))              # (N, nz, H-1, W-1)
    classifier = jnp.transpose(cls, (1, 0, 2, 3)).reshape(-1)
    return classifier, features


# ---------------------------------------------------------------------------
# parameters + forward
# ---------------------------------------------------------------------------

def _conv_w(key, cout, cin, kh, kw):
    fan_in = cin * kh * kw
    bound = 1.0 / (fan_in ** 0.5)
    return jax.random.uniform(key, (cout, cin, kh, kw), jnp.float32, -bound, bound)


def init_netd_params(key, isize, nc, ngf, extralayers, clim=8, nz=1):
    assert isize % 16 == 0, "isize has to be a multiple of 16"
    keys = iter(jax.random.split(key, 64))
    params = {"initial": _conv_w(next(keys), ngf, nc, 2, 2)}
    csize, cndf = isize // 2, ngf
    extra = []
    for _ in range(extralayers):
        extra.append({"w": _conv_w(next(keys), cndf, cndf, 3, 3),
                      "gamma": jnp.ones((cndf,), jnp.float32),
                      "beta": jnp.zeros((cndf,), jnp.float32)})
    params["extra"] = extra
    pyramid = []
    while csize > clim:
        pyramid.append({"w": _conv_w(next(keys), cndf * 2, cndf, 2, 2),
                        "gamma": jnp.ones((cndf * 2,), jnp.float32),
                        "beta": jnp.zeros((cndf * 2,), jnp.float32)})
        cndf *= 2
        csize //= 2
    params["pyramid"] = pyramid
    params["final"] = _conv_w(next(keys), nz, cndf, 2, 2)
    return params


def netd_forward(params, x):
    """x: (N, nc, isize, isize) NCHW f32.  Returns (classifier, features)."""
    # TODO(synk): ngpu>1 nn.DataParallel has no single-device Pallas equivalent.
    a = jnp.transpose(x, (1, 0, 2, 3)).astype(jnp.bfloat16)   # channel-major

    # initial: Conv2d(nc, ngf, 2, 2, 0, bias=False) + LeakyReLU(0.2)
    a = conv2x2_s2_layer(a, params["initial"], bn=None)

    # extra layers: Conv2d(c, c, 3, 1, 1) + BatchNorm2d + LeakyReLU(0.2)
    for layer in params["extra"]:
        a = conv3x3_bn_lrelu_layer(a, layer["w"], layer["gamma"], layer["beta"])

    # pyramid: Conv2d(c, 2c, 2, 2, 0) + BatchNorm2d + LeakyReLU(0.2)
    for layer in params["pyramid"]:
        a = conv2x2_s2_layer(a, layer["w"], bn=layer)

    # final 1-channel conv (part of `features`) + Sigmoid classifier head
    classifier, features = final_conv_sigmoid_layer(a, params["final"])
    return classifier, features


# ---------------------------------------------------------------------------

if __name__ == "__main__":
    class Opt:
        isize = 32       # multiple of 16
        nc = 3
        ngf = 8
        ngpu = 1
        extralayers = 1

    opt = Opt()
    key = jax.random.PRNGKey(0)
    kp, kx = jax.random.split(key)

    params = init_netd_params(kp, opt.isize, opt.nc, opt.ngf, opt.extralayers)
    x = jax.random.normal(kx, (2, opt.nc, opt.isize, opt.isize), jnp.float32)

    classifier, features = jax.jit(netd_forward)(params, x)
    jax.block_until_ready((classifier, features))

    # 32 -> 16 (initial) -> 16 (extra) -> 8 (pyramid) -> 7x7 (final 2x2 s1), nz=1
    assert features.shape == (2, 1, 7, 7), features.shape
    assert classifier.shape == (2 * 7 * 7,), classifier.shape
    assert bool(jnp.all(jnp.isfinite(features)))
    assert bool(jnp.all((classifier >= 0) & (classifier <= 1)))

    print("KERNEL_OK")
</pallas_src>

<mosaic_0001>
module attributes {stable_mosaic.version = 11 : i64} {
  func.func @_conv_lrelu_kernel(%arg0: i32, %arg1: memref<8x12xbf16, #tpu.memory_space<vmem>>, %arg2: memref<12x512xbf16, #tpu.memory_space<vmem>>, %arg3: memref<8x512xbf16, #tpu.memory_space<vmem>>) attributes {dimension_semantics = [#tpu.dimension_semantics<parallel>], iteration_bounds = array<i64: 1>, scalar_prefetch = 0 : i64, scratch_operands = 0 : i64, tpu.core_type = #tpu.core_type<tc>, window_params = [{pipeline_mode = #tpu.pipeline_mode<synchronous>, transform_indices = @transform_0, window_bounds = array<i64: 8, 12>}, {transform_indices = @transform_1, window_bounds = array<i64: 12, 512>}, {transform_indices = @transform_2, window_bounds = array<i64: 8, 512>}]} {
    %c0 = arith.constant 0 : index
    %c0_0 = arith.constant 0 : index
    %0 = vector.load %arg1[%c0, %c0_0] : memref<8x12xbf16, #tpu.memory_space<vmem>>, vector<8x12xbf16>
    %c0_1 = arith.constant 0 : index
    %c0_2 = arith.constant 0 : index
    %1 = vector.load %arg2[%c0_1, %c0_2] : memref<12x512xbf16, #tpu.memory_space<vmem>>, vector<12x512xbf16>
    %cst = arith.constant dense<0.000000e+00> : vector<8x512xf32>
    %2 = tpu.matmul %0, %1, %cst {dimension_numbers = #tpu.dot_dimension_numbers<[1], [0], [0], [1], [0, 0, 1, 1], [], []>} : vector<8x12xbf16>, vector<12x512xbf16>, vector<8x512xf32> -> vector<8x512xf32>
    %cst_3 = arith.constant 0.000000e+00 : f32
    %3 = vector.broadcast %cst_3 : f32 to vector<8x512xf32>
    %4 = arith.cmpf ogt, %2, %3 : vector<8x512xf32>
    %cst_4 = arith.constant 2.000000e-01 : f32
    %5 = vector.broadcast %cst_4 : f32 to vector<8x512xf32>
    %6 = arith.mulf %5, %2 : vector<8x512xf32>
    %7 = arith.select %4, %2, %6 : vector<8x512xi1>, vector<8x512xf32>
    %8 = arith.truncf %7 : vector<8x512xf32> to vector<8x512xbf16>
    %c0_5 = arith.constant 0 : index
    %c0_6 = arith.constant 0 : index
    %9 = vector.load %arg3[%c0_5, %c0_6] : memref<8x512xbf16, #tpu.memory_space<vmem>>, vector<8x512xbf16>
    tpu.vector_store %arg3[%c0_5, %c0_6], %8 {strides = array<i32>} : memref<8x512xbf16, #tpu.memory_space<vmem>>, vector<8x512xbf16>,
    return
  }
  func.func @transform_0(%arg0: i32) -> (i32, i32) {
    %c0_i32 = arith.constant 0 : i32
    %c0_i32_0 = arith.constant 0 : i32
    %c0_i32_1 = arith.constant 0 : i32
    return %c0_i32, %c0_i32_0 : i32, i32
  }
  func.func @transform_1(%arg0: i32) -> (i32, i32) {
    %c0_i32 = arith.constant 0 : i32
    %c0_i32_0 = arith.constant 0 : i32
    return %c0_i32, %arg0 : i32, i32
  }
  func.func @transform_2(%arg0: i32) -> (i32, i32) {
    %c0_i32 = arith.constant 0 : i32
    %c0_i32_0 = arith.constant 0 : i32
    return %c0_i32, %arg0 : i32, i32
  }
}

module attributes {stable_mosaic.version = 11 : i64} {
  func.func @_conv3x3_bn_lrelu_kernel(%arg0: i32, %arg1: i32, %arg2: memref<72x8xbf16, #tpu.memory_space<vmem>>, %arg3: memref<8x1xf32, #tpu.memory_space<vmem>>, %arg4: memref<8x1xf32, #tpu.memory_space<vmem>>, %arg5: memref<1x768xf32, #tpu.memory_space<vmem>>, %arg6: memref<8x768xbf16, #tpu.memory_space<vmem>>, %arg7: memref<8x768xbf16, #tpu.memory_space<vmem>>, %arg8: memref<1x8x768xf32, #tpu.memory_space<vmem>>, %arg9: memref<8x1xf32, #tpu.memory_space<vmem>>, %arg10: memref<8x1xf32, #tpu.memory_space<vmem>>, %arg11: memref<8x1xf32, #tpu.memory_space<vmem>>, %arg12: memref<8x1xf32, #tpu.memory_space<vmem>>) attributes {dimension_semantics = [#tpu.dimension_semantics<arbitrary>, #tpu.dimension_semantics<arbitrary>], iteration_bounds = array<i64: 2, 1>, scalar_prefetch = 0 : i64, scratch_operands = 5 : i64, tpu.core_type = #tpu.core_type<tc>, window_params = [{pipeline_mode = #tpu.pipeline_mode<synchronous>, transform_indices = @transform_0, window_bounds = array<i64: 72, 8>}, {pipeline_mode = #tpu.pipeline_mode<synchronous>, transform_indices = @transform_1, window_bounds = array<i64: 8, 1>}, {pipeline_mode = #tpu.pipeline_mode<synchronous>, transform_indices = @transform_2, window_bounds = array<i64: 8, 1>}, {transform_indices = @transform_3, window_bounds = array<i64: 1, 768>}, {transform_indices = @transform_4, window_bounds = array<i64: 8, 768>}, {transform_indices = @transform_5, window_bounds = array<i64: 8, 768>}]} {
    %c0_i32 = arith.constant 0 : i32
    %0 = arith.cmpi eq, %arg0, %c0_i32 : i32
    %c0_i32_0 = arith.constant 0 : i32
    %1 = arith.cmpi eq, %arg1, %c0_i32_0 : i32
    %2 = arith.andi %0, %1 : i1
    %3 = arith.extui %2 : i1 to i32
    %c0_i32_1 = arith.constant 0 : i32
    %4 = arith.cmpi ne, %3, %c0_i32_1 : i32
    scf.if %4 {
      %cst = arith.constant 0.000000e+00 : f32
      %16 = vector.broadcast %cst : f32 to vector<8x1xf32>
      %c0 = arith.constant 0 : index
      %c0_8 = arith.constant 0 : index
      %17 = vector.load %arg9[%c0, %c0_8] : memref<8x1xf32, #tpu.memory_space<vmem>>, vector<8x1xf32>
      tpu.vector_store %arg9[%c0, %c0_8], %16 {strides = array<i32>} : memref<8x1xf32, #tpu.memory_space<vmem>>, vector<8x1xf32>,
      %cst_9 = arith.constant 0.000000e+00 : f32
      %18 = vector.broadcast %cst_9 : f32 to vector<8x1xf32>
      %c0_10 = arith.constant 0 : index
      %c0_11 = arith.constant 0 : index
      %19 = vector.load %arg10[%c0_10, %c0_11] : memref<8x1xf32, #tpu.memory_space<vmem>>, vector<8x1xf32>
      tpu.vector_store %arg10[%c0_10, %c0_11], %18 {strides = array<i32>} : memref<8x1xf32, #tpu.memory_space<vmem>>, vector<8x1xf32>,
    } else {
    }
    %c0_i32_2 = arith.constant 0 : i32
    %5 = arith.cmpi eq, %arg0, %c0_i32_2 : i32
    %6 = arith.extui %5 : i1 to i32
    %c0_i32_3 = arith.constant 0 : i32
    %7 = arith.cmpi ne, %6, %c0_i32_3 : i32
    scf.if %7 {
      %c0 = arith.constant 0 : index
      %c0_8 = arith.constant 0 : index
      %16 = vector.load %arg6[%c0, %c0_8] : memref<8x768xbf16, #tpu.memory_space<vmem>>, vector<8x768xbf16>
      %c0_9 = arith.constant 0 : index
      %c0_10 = arith.constant 0 : index
      %17 = vector.load %arg2[%c0_9, %c0_10] : memref<72x8xbf16, #tpu.memory_space<vmem>>, vector<72x8xbf16>
      %cst = arith.constant dense<0.000000e+00> : vector<72x768xf32>
      %18 = tpu.matmul %17, %16, %cst {dimension_numbers = #tpu.dot_dimension_numbers<[1], [0], [0], [1], [0, 0, 1, 1], [], []>} : vector<72x8xbf16>, vector<8x768xbf16>, vector<72x768xf32> -> vector<72x768xf32>
      %cst_11 = arith.constant 0.000000e+00 : f32
      %19 = vector.broadcast %cst_11 : f32 to vector<8x768xf32>
      %20 = vector.extract_strided_slice %18 {offsets = [0, 0], sizes = [8, 768], strides = [1, 1]} : vector<72x768xf32> to vector<8x768xf32>
      %c19_i32 = arith.constant 19 : i32
      %21 = tpu.dynamic_rotate %20 by %c19_i32 dim 1 : vector<8x768xf32>, i32 -> vector<8x768xf32>
      %22 = arith.addf %19, %21 : vector<8x768xf32>
      %23 = vector.extract_strided_slice %18 {offsets = [8, 0], sizes = [8, 768], strides = [1, 1]} : vector<72x768xf32> to vector<8x768xf32>
      %c18_i32 = arith.constant 18 : i32
      %24 = tpu.dynamic_rotate %23 by %c18_i32 dim 1 : vector<8x768xf32>, i32 -> vector<8x768xf32>
      %25 = arith.addf %22, %24 : vector<8x768xf32>
      %26 = vector.extract_strided_slice %18 {offsets = [16, 0], sizes = [8, 768], strides = [1, 1]} : vector<72x768xf32> to vector<8x768xf32>
      %c17_i32 = arith.constant 17 : i32
      %27 = tpu.dynamic_rotate %26 by %c17_i32 dim 1 : vector<8x768xf32>, i32 -> vector<8x768xf32>
      %28 = arith.addf %25, %27 : vector<8x768xf32>
      %29 = vector.extract_strided_slice %18 {offsets = [24, 0], sizes = [8, 768], strides = [1, 1]} : vector<72x768xf32> to vector<8x768xf32>
      %c1_i32_12 = arith.constant 1 : i32
      %30 = tpu.dynamic_rotate %29 by %c1_i32_12 dim 1 : vector<8x768xf32>, i32 -> vector<8x768xf32>
      %31 = arith.addf %28, %30 : vector<8x768xf32>
      %32 = vector.extract_strided_slice %18 {offsets = [32, 0], sizes = [8, 768], strides = [1, 1]} : vector<72x768xf32> to vector<8x768xf32>
      %33 = arith.addf %31, %32 : vector<8x768xf32>
      %34 = vector.extract_strided_slice %18 {offsets = [40, 0], sizes = [8, 768], strides = [1, 1]} : vector<72x768xf32> to vector<8x768xf32>
      %c767_i32 = arith.constant 767 : i32
      %35 = tpu.dynamic_rotate %34 by %c767_i32 dim 1 : vector<8x768xf32>, i32 -> vector<8x768xf32>
      %36 = arith.addf %33, %35 : vector<8x768xf32>
      %37 = vector.extract_strided_slice %18 {offsets = [48, 0], sizes = [8, 768], strides = [1, 1]} : vector<72x768xf32> to vector<8x768xf32>
      %c751_i32 = arith.constant 751 : i32
      %38 = tpu.dynamic_rotate %37 by %c751_i32 dim 1 : vector<8x768xf32>, i32 -> vector<8x768xf32>
      %39 = arith.addf %36, %38 : vector<8x768xf32>
      %40 = vector.extract_strided_slice %18 {offsets = [56, 0], sizes = [8, 768], strides = [1, 1]} : vector<72x768xf32> to vector<8x768xf32>
      %c750_i32 = arith.constant 750 : i32
      %41 = tpu.dynamic_rotate %40 by %c750_i32 dim 1 : vector<8x768xf32>, i32 -> vector<8x768xf32>
      %42 = arith.addf %39, %41 : vector<8x768xf32>
      %43 = vector.extract_strided_slice %18 {offsets = [64, 0], sizes = [8, 768], strides = [1, 1]} : vector<72x768xf32> to vector<8x768xf32>
      %c749_i32 = arith.constant 749 : i32
      %44 = tpu.dynamic_rotate %43 by %c749_i32 dim 1 : vector<8x768xf32>, i32 -> vector<8x768xf32>
      %45 = arith.addf %42, %44 : vector<8x768xf32>
      %46 = arith.index_cast %arg1 : i32 to index
      %c0_13 = arith.constant 0 : index
      %c0_14 = arith.constant 0 : index
      %47 = vector.load %arg8[%46, %c0_13, %c0_14] : memref<1x8x768xf32, #tpu.memory_space<vmem>>, vector<1x8x768xf32>
      %48 = vector.shape_cast %47 : vector<1x8x768xf32> to vector<8x768xf32>
      %49 = vector.shape_cast %45 : vector<8x768xf32> to vector<1x8x768xf32>
      tpu.vector_store %arg8[%46, %c0_13, %c0_14], %49 {strides = array<i32>} : memref<1x8x768xf32, #tpu.memory_space<vmem>>, vector<1x8x768xf32>,
      %c0_15 = arith.constant 0 : index
      %c0_16 = arith.constant 0 : index
      %50 = vector.load %arg5[%c0_15, %c0_16] : memref<1x768xf32, #tpu.memory_space<vmem>>, vector<1x768xf32>
      %51 = vector.broadcast %50 : vector<1x768xf32> to vector<8x768xf32>
      %52 = arith.mulf %45, %51 : vector<8x768xf32>
      %c0_17 = arith.constant 0 : index
      %c0_18 = arith.constant 0 : index
      %53 = vector.load %arg9[%c0_17, %c0_18] : memref<8x1xf32, #tpu.memory_space<vmem>>, vector<8x1xf32>
      %cst_19 = arith.constant dense<0.000000e+00> : vector<8xf32>
      %54 = vector.multi_reduction <add>, %52, %cst_19 [1] : vector<8x768xf32> to vector<8xf32>
      %55 = vector.shape_cast %54 : vector<8xf32> to vector<8x1xf32>
      %56 = arith.addf %53, %55 : vector<8x1xf32>
      %c0_20 = arith.constant 0 : index
      %c0_21 = arith.constant 0 : index
      %57 = vector.load %arg9[%c0_20, %c0_21] : memref<8x1xf32, #tpu.memory_space<vmem>>, vector<8x1xf32>
      tpu.vector_store %arg9[%c0_20, %c0_21], %56 {strides = array<i32>} : memref<8x1xf32, #tpu.memory_space<vmem>>, vector<8x1xf32>,
      %c0_22 = arith.constant 0 : index
      %c0_23 = arith.constant 0 : index
      %58 = vector.load %arg10[%c0_22, %c0_23] : memref<8x1xf32, #tpu.memory_space<vmem>>, vector<8x1xf32>
      %59 = arith.mulf %52, %52 : vector<8x768xf32>
      %cst_24 = arith.constant dense<0.000000e+00> : vector<8xf32>
      %60 = vector.multi_reduction <add>, %59, %cst_24 [1] : vector<8x768xf32> to vector<8xf32>
      %61 = vector.shape_cast %60 : vector<8xf32> to vector<8x1xf32>
      %62 = arith.addf %58, %61 : vector<8x1xf32>
      %c0_25 = arith.constant 0 : index
      %c0_26 = arith.constant 0 : index
      %63 = vector.load %arg10[%c0_25, %c0_26] : memref<8x1xf32, #tpu.memory_space<vmem>>, vector<8x1xf32>
      tpu.vector_store %arg10[%c0_25, %c0_26], %62 {strides = array<i32>} : memref<8x1xf32, #tpu.memory_space<vmem>>, vector<8x1xf32>,
    } else {
    }
    %c1_i32 = arith.constant 1 : i32
    %8 = arith.cmpi eq, %arg0, %c1_i32 : i32
    %c0_i32_4 = arith.constant 0 : i32
    %9 = arith.cmpi eq, %arg1, %c0_i32_4 : i32
    %10 = arith.andi %8, %9 : i1
    %11 = arith.extui %10 : i1 to i32
    %c0_i32_5 = arith.constant 0 : i32
    %12 = arith.cmpi ne, %11, %c0_i32_5 : i32
    scf.if %12 {
      %c0 = arith.constant 0 : index
      %c0_8 = arith.constant 0 : index
      %16 = vector.load %arg9[%c0, %c0_8] : memref<8x1xf32, #tpu.memory_space<vmem>>, vector<8x1xf32>
      %cst = arith.constant 0.001953125 : f32
      %17 = vector.broadcast %cst : f32 to vector<8x1xf32>
      %18 = arith.mulf %16, %17 : vector<8x1xf32>
      %c0_9 = arith.constant 0 : index
      %c0_10 = arith.constant 0 : index
      %19 = vector.load %arg10[%c0_9, %c0_10] : memref<8x1xf32, #tpu.memory_space<vmem>>, vector<8x1xf32>
      %cst_11 = arith.constant 0.001953125 : f32
      %20 = vector.broadcast %cst_11 : f32 to vector<8x1xf32>
      %21 = arith.mulf %19, %20 : vector<8x1xf32>
      %22 = arith.mulf %18, %18 : vector<8x1xf32>
      %23 = arith.subf %21, %22 : vector<8x1xf32>
      %cst_12 = arith.constant 0.000000e+00 : f32
      %24 = vector.broadcast %cst_12 : f32 to vector<8x1xf32>
      %25 = arith.maximumf %23, %24 : vector<8x1xf32>
      %c0_13 = arith.constant 0 : index
      %c0_14 = arith.constant 0 : index
      %26 = vector.load %arg3[%c0_13, %c0_14] : memref<8x1xf32, #tpu.memory_space<vmem>>, vector<8x1xf32>
      %cst_15 = arith.constant 9.99999974E-6 : f32
      %27 = vector.broadcast %cst_15 : f32 to vector<8x1xf32>
      %28 = arith.addf %25, %27 : vector<8x1xf32>
      %29 = math.rsqrt %28 : vector<8x1xf32>
      %30 = arith.mulf %26, %29 : vector<8x1xf32>
      %c0_16 = arith.constant 0 : index
      %c0_17 = arith.constant 0 : index
      %31 = vector.load %arg11[%c0_16, %c0_17] : memref<8x1xf32, #tpu.memory_space<vmem>>, vector<8x1xf32>
      tpu.vector_store %arg11[%c0_16, %c0_17], %30 {strides = array<i32>} : memref<8x1xf32, #tpu.memory_space<vmem>>, vector<8x1xf32>,
      %c0_18 = arith.constant 0 : index
      %c0_19 = arith.constant 0 : index
      %32 = vector.load %arg4[%c0_18, %c0_19] : memref<8x1xf32, #tpu.memory_space<vmem>>, vector<8x1xf32>
      %33 = arith.mulf %18, %30 : vector<8x1xf32>
      %34 = arith.subf %32, %33 : vector<8x1xf32>
      %c0_20 = arith.constant 0 : index
      %c0_21 = arith.constant 0 : index
      %35 = vector.load %arg12[%c0_20, %c0_21] : memref<8x1xf32, #tpu.memory_space<vmem>>, vector<8x1xf32>
      tpu.vector_store %arg12[%c0_20, %c0_21], %34 {strides = array<i32>} : memref<8x1xf32, #tpu.memory_space<vmem>>, vector<8x1xf32>,
    } else {
    }
    %c1_i32_6 = arith.constant 1 : i32
    %13 = arith.cmpi eq, %arg0, %c1_i32_6 : i32
    %14 = arith.extui %13 : i1 to i32
    %c0_i32_7 = arith.constant 0 : i32
    %15 = arith.cmpi ne, %14, %c0_i32_7 : i32
    scf.if %15 {
      %16 = arith.index_cast %arg1 : i32 to index
      %c0 = arith.constant 0 : index
      %c0_8 = arith.constant 0 : index
      %17 = vector.load %arg8[%16, %c0, %c0_8] : memref<1x8x768xf32, #tpu.memory_space<vmem>>, vector<1x8x768xf32>
      %18 = vector.shape_cast %17 : vector<1x8x768xf32> to vector<8x768xf32>
      %c0_9 = arith.constant 0 : index
      %c0_10 = arith.constant 0 : index
      %19 = vector.load %arg11[%c0_9, %c0_10] : memref<8x1xf32, #tpu.memory_space<vmem>>, vector<8x1xf32>
      %20 = vector.broadcast %19 : vector<8x1xf32> to vector<8x768xf32>
      %21 = arith.mulf %18, %20 : vector<8x768xf32>
      %c0_11 = arith.constant 0 : index
      %c0_12 = arith.constant 0 : index
      %22 = vector.load %arg12[%c0_11, %c0_12] : memref<8x1xf32, #tpu.memory_space<vmem>>, vector<8x1xf32>
      %23 = vector.broadcast %22 : vector<8x1xf32> to vector<8x768xf32>
      %24 = arith.addf %21, %23 : vector<8x768xf32>
      %cst = arith.constant 0.000000e+00 : f32
      %25 = vector.broadcast %cst : f32 to vector<8x768xf32>
      %26 = arith.cmpf ogt, %24, %25 : vector<8x768xf32>
      %cst_13 = arith.constant 2.000000e-01 : f32
      %27 = vector.broadcast %cst_13 : f32 to vector<8x768xf32>
      %28 = arith.mulf %27, %24 : vector<8x768xf32>
      %29 = arith.select %26, %24, %28 : vector<8x768xi1>, vector<8x768xf32>
      %30 = arith.truncf %29 : vector<8x768xf32> to vector<8x768xbf16>
      %c0_14 = arith.constant 0 : index
      %c0_15 = arith.constant 0 : index
      %31 = vector.load %arg7[%c0_14, %c0_15] : memref<8x768xbf16, #tpu.memory_space<vmem>>, vector<8x768xbf16>
      tpu.vector_store %arg7[%c0_14, %c0_15], %30 {strides = array<i32>} : memref<8x768xbf16, #tpu.memory_space<vmem>>, vector<8x768xbf16>,
    } else {
    }
    return
  }
  func.func @transform_0(%arg0: i32, %arg1: i32) -> (i32, i32) {
    %c0_i32 = arith.constant 0 : i32
    %c0_i32_0 = arith.constant 0 : i32
    %c0_i32_1 = arith.constant 0 : i32
    return %c0_i32, %c0_i32_0 : i32, i32
  }
  func.func @transform_1(%arg0: i32, %arg1: i32) -> (i32, i32) {
    %c0_i32 = arith.constant 0 : i32
    %c0_i32_0 = arith.constant 0 : i32
    %c0_i32_1 = arith.constant 0 : i32
    return %c0_i32, %c0_i32_0 : i32, i32
  }
  func.func @transform_2(%arg0: i32, %arg1: i32) -> (i32, i32) {
    %c0_i32 = arith.constant 0 : i32
    %c0_i32_0 = arith.constant 0 : i32
    %c0_i32_1 = arith.constant 0 : i32
    return %c0_i32, %c0_i32_0 : i32, i32
  }
  func.func @transform_3(%arg0: i32, %arg1: i32) -> (i32, i32) {
    %c1_i32 = arith.constant 1 : i32
    %0 = arith.subi %c1_i32, %arg0 : i32
    %1 = arith.muli %arg1, %0 : i32
    %c0_i32 = arith.constant 0 : i32
    %c0_i32_0 = arith.constant 0 : i32
    return %c0_i32, %1 : i32, i32
  }
  func.func @transform_4(%arg0: i32, %arg1: i32) -> (i32, i32) {
    %c1_i32 = arith.constant 1 : i32
    %0 = arith.subi %c1_i32, %arg0 : i32
    %1 = arith.muli %arg1, %0 : i32
    %c0_i32 = arith.constant 0 : i32
    %c0_i32_0 = arith.constant 0 : i32
    return %c0_i32, %1 : i32, i32
  }
  func.func @transform_5(%arg0: i32, %arg1: i32) -> (i32, i32) {
    %0 = arith.muli %arg0, %arg1 : i32
    %c0_i32 = arith.constant 0 : i32
    %c0_i32_0 = arith.constant 0 : i32
    return %c0_i32, %0 : i32, i32
  }
}

module attributes {stable_mosaic.version = 11 : i64} {
  func.func @_conv_bn_lrelu_kernel(%arg0: i32, %arg1: i32, %arg2: memref<16x32xbf16, #tpu.memory_space<vmem>>, %arg3: memref<16x1xf32, #tpu.memory_space<vmem>>, %arg4: memref<16x1xf32, #tpu.memory_space<vmem>>, %arg5: memref<32x128xbf16, #tpu.memory_space<vmem>>, %arg6: memref<16x128xbf16, #tpu.memory_space<vmem>>, %arg7: memref<1x16x128xf32, #tpu.memory_space<vmem>>, %arg8: memref<16x1xf32, #tpu.memory_space<vmem>>, %arg9: memref<16x1xf32, #tpu.memory_space<vmem>>, %arg10: memref<16x1xf32, #tpu.memory_space<vmem>>, %arg11: memref<16x1xf32, #tpu.memory_space<vmem>>) attributes {dimension_semantics = [#tpu.dimension_semantics<arbitrary>, #tpu.dimension_semantics<arbitrary>], iteration_bounds = array<i64: 2, 1>, scalar_prefetch = 0 : i64, scratch_operands = 5 : i64, tpu.core_type = #tpu.core_type<tc>, window_params = [{pipeline_mode = #tpu.pipeline_mode<synchronous>, transform_indices = @transform_0, window_bounds = array<i64: 16, 32>}, {pipeline_mode = #tpu.pipeline_mode<synchronous>, transform_indices = @transform_1, window_bounds = array<i64: 16, 1>}, {pipeline_mode = #tpu.pipeline_mode<synchronous>, transform_indices = @transform_2, window_bounds = array<i64: 16, 1>}, {transform_indices = @transform_3, window_bounds = array<i64: 32, 128>}, {transform_indices = @transform_4, window_bounds = array<i64: 16, 128>}]} {
    %c0_i32 = arith.constant 0 : i32
    %0 = arith.cmpi eq, %arg0, %c0_i32 : i32
    %c0_i32_0 = arith.constant 0 : i32
    %1 = arith.cmpi eq, %arg1, %c0_i32_0 : i32
    %2 = arith.andi %0, %1 : i1
    %3 = arith.extui %2 : i1 to i32
    %c0_i32_1 = arith.constant 0 : i32
    %4 = arith.cmpi ne, %3, %c0_i32_1 : i32
    scf.if %4 {
      %cst = arith.constant 0.000000e+00 : f32
      %16 = vector.broadcast %cst : f32 to vector<16x1xf32>
      %c0 = arith.constant 0 : index
      %c0_8 = arith.constant 0 : index
      %17 = vector.load %arg8[%c0, %c0_8] : memref<16x1xf32, #tpu.memory_space<vmem>>, vector<16x1xf32>
      tpu.vector_store %arg8[%c0, %c0_8], %16 {strides = array<i32>} : memref<16x1xf32, #tpu.memory_space<vmem>>, vector<16x1xf32>,
      %cst_9 = arith.constant 0.000000e+00 : f32
      %18 = vector.broadcast %cst_9 : f32 to vector<16x1xf32>
      %c0_10 = arith.constant 0 : index
      %c0_11 = arith.constant 0 : index
      %19 = vector.load %arg9[%c0_10, %c0_11] : memref<16x1xf32, #tpu.memory_space<vmem>>, vector<16x1xf32>
      tpu.vector_store %arg9[%c0_10, %c0_11], %18 {strides = array<i32>} : memref<16x1xf32, #tpu.memory_space<vmem>>, vector<16x1xf32>,
    } else {
    }
    %c0_i32_2 = arith.constant 0 : i32
    %5 = arith.cmpi eq, %arg0, %c0_i32_2 : i32
    %6 = arith.extui %5 : i1 to i32
    %c0_i32_3 = arith.constant 0 : i32
    %7 = arith.cmpi ne, %6, %c0_i32_3 : i32
    scf.if %7 {
      %c0 = arith.constant 0 : index
      %c0_8 = arith.constant 0 : index
      %16 = vector.load %arg2[%c0, %c0_8] : memref<16x32xbf16, #tpu.memory_space<vmem>>, vector<16x32xbf16>
      %c0_9 = arith.constant 0 : index
      %c0_10 = arith.constant 0 : index
      %17 = vector.load %arg5[%c0_9, %c0_10] : memref<32x128xbf16, #tpu.memory_space<vmem>>, vector<32x128xbf16>
      %cst = arith.constant dense<0.000000e+00> : vector<16x128xf32>
      %18 = tpu.matmul %16, %17, %cst {dimension_numbers = #tpu.dot_dimension_numbers<[1], [0], [0], [1], [0, 0, 1, 1], [], []>} : vector<16x32xbf16>, vector<32x128xbf16>, vector<16x128xf32> -> vector<16x128xf32>
      %19 = arith.index_cast %arg1 : i32 to index
      %c0_11 = arith.constant 0 : index
      %c0_12 = arith.constant 0 : index
      %20 = vector.load %arg7[%19, %c0_11, %c0_12] : memref<1x16x128xf32, #tpu.memory_space<vmem>>, vector<1x16x128xf32>
      %21 = vector.shape_cast %20 : vector<1x16x128xf32> to vector<16x128xf32>
      %22 = vector.shape_cast %18 : vector<16x128xf32> to vector<1x16x128xf32>
      tpu.vector_store %arg7[%19, %c0_11, %c0_12], %22 {strides = array<i32>} : memref<1x16x128xf32, #tpu.memory_space<vmem>>, vector<1x16x128xf32>,
      %c0_13 = arith.constant 0 : index
      %c0_14 = arith.constant 0 : index
      %23 = vector.load %arg8[%c0_13, %c0_14] : memref<16x1xf32, #tpu.memory_space<vmem>>, vector<16x1xf32>
      %cst_15 = arith.constant dense<0.000000e+00> : vector<16xf32>
      %24 = vector.multi_reduction <add>, %18, %cst_15 [1] : vector<16x128xf32> to vector<16xf32>
      %25 = vector.shape_cast %24 : vector<16xf32> to vector<16x1xf32>
      %26 = arith.addf %23, %25 : vector<16x1xf32>
      %c0_16 = arith.constant 0 : index
      %c0_17 = arith.constant 0 : index
      %27 = vector.load %arg8[%c0_16, %c0_17] : memref<16x1xf32, #tpu.memory_space<vmem>>, vector<16x1xf32>
      tpu.vector_store %arg8[%c0_16, %c0_17], %26 {strides = array<i32>} : memref<16x1xf32, #tpu.memory_space<vmem>>, vector<16x1xf32>,
      %c0_18 = arith.constant 0 : index
      %c0_19 = arith.constant 0 : index
      %28 = vector.load %arg9[%c0_18, %c0_19] : memref<16x1xf32, #tpu.memory_space<vmem>>, vector<16x1xf32>
      %29 = arith.mulf %18, %18 : vector<16x128xf32>
      %cst_20 = arith.constant dense<0.000000e+00> : vector<16xf32>
      %30 = vector.multi_reduction <add>, %29, %cst_20 [1] : vector<16x128xf32> to vector<16xf32>
      %31 = vector.shape_cast %30 : vector<16xf32> to vector<16x1xf32>
      %32 = arith.addf %28, %31 : vector<16x1xf32>
      %c0_21 = arith.constant 0 : index
      %c0_22 = arith.constant 0 : index
      %33 = vector.load %arg9[%c0_21, %c0_22] : memref<16x1xf32, #tpu.memory_space<vmem>>, vector<16x1xf32>
      tpu.vector_store %arg9[%c0_21, %c0_22], %32 {strides = array<i32>} : memref<16x1xf32, #tpu.memory_space<vmem>>, vector<16x1xf32>,
    } else {
    }
    %c1_i32 = arith.constant 1 : i32
    %8 = arith.cmpi eq, %arg0, %c1_i32 : i32
    %c0_i32_4 = arith.constant 0 : i32
    %9 = arith.cmpi eq, %arg1, %c0_i32_4 : i32
    %10 = arith.andi %8, %9 : i1
    %11 = arith.extui %10 : i1 to i32
    %c0_i32_5 = arith.constant 0 : i32
    %12 = arith.cmpi ne, %11, %c0_i32_5 : i32
    scf.if %12 {
      %c0 = arith.constant 0 : index
      %c0_8 = arith.constant 0 : index
      %16 = vector.load %arg8[%c0, %c0_8] : memref<16x1xf32, #tpu.memory_space<vmem>>, vector<16x1xf32>
      %cst = arith.constant 7.812500e-03 : f32
      %17 = vector.broadcast %cst : f32 to vector<16x1xf32>
      %18 = arith.mulf %16, %17 : vector<16x1xf32>
      %c0_9 = arith.constant 0 : index
      %c0_10 = arith.constant 0 : index
      %19 = vector.load %arg9[%c0_9, %c0_10] : memref<16x1xf32, #tpu.memory_space<vmem>>, vector<16x1xf32>
      %cst_11 = arith.constant 7.812500e-03 : f32
      %20 = vector.broadcast %cst_11 : f32 to vector<16x1xf32>
      %21 = arith.mulf %19, %20 : vector<16x1xf32>
      %22 = arith.mulf %18, %18 : vector<16x1xf32>
      %23 = arith.subf %21, %22 : vector<16x1xf32>
      %cst_12 = arith.constant 0.000000e+00 : f32
      %24 = vector.broadcast %cst_12 : f32 to vector<16x1xf32>
      %25 = arith.maximumf %23, %24 : vector<16x1xf32>
      %c0_13 = arith.constant 0 : index
      %c0_14 = arith.constant 0 : index
      %26 = vector.load %arg3[%c0_13, %c0_14] : memref<16x1xf32, #tpu.memory_space<vmem>>, vector<16x1xf32>
      %cst_15 = arith.constant 9.99999974E-6 : f32
      %27 = vector.broadcast %cst_15 : f32 to vector<16x1xf32>
      %28 = arith.addf %25, %27 : vector<16x1xf32>
      %29 = math.rsqrt %28 : vector<16x1xf32>
      %30 = arith.mulf %26, %29 : vector<16x1xf32>
      %c0_16 = arith.constant 0 : index
      %c0_17 = arith.constant 0 : index
      %31 = vector.load %arg10[%c0_16, %c0_17] : memref<16x1xf32, #tpu.memory_space<vmem>>, vector<16x1xf32>
      tpu.vector_store %arg10[%c0_16, %c0_17], %30 {strides = array<i32>} : memref<16x1xf32, #tpu.memory_space<vmem>>, vector<16x1xf32>,
      %c0_18 = arith.constant 0 : index
      %c0_19 = arith.constant 0 : index
      %32 = vector.load %arg4[%c0_18, %c0_19] : memref<16x1xf32, #tpu.memory_space<vmem>>, vector<16x1xf32>
      %33 = arith.mulf %18, %30 : vector<16x1xf32>
      %34 = arith.subf %32, %33 : vector<16x1xf32>
      %c0_20 = arith.constant 0 : index
      %c0_21 = arith.constant 0 : index
      %35 = vector.load %arg11[%c0_20, %c0_21] : memref<16x1xf32, #tpu.memory_space<vmem>>, vector<16x1xf32>
      tpu.vector_store %arg11[%c0_20, %c0_21], %34 {strides = array<i32>} : memref<16x1xf32, #tpu.memory_space<vmem>>, vector<16x1xf32>,
    } else {
    }
    %c1_i32_6 = arith.constant 1 : i32
    %13 = arith.cmpi eq, %arg0, %c1_i32_6 : i32
    %14 = arith.extui %13 : i1 to i32
    %c0_i32_7 = arith.constant 0 : i32
    %15 = arith.cmpi ne, %14, %c0_i32_7 : i32
    scf.if %15 {
      %16 = arith.index_cast %arg1 : i32 to index
      %c0 = arith.constant 0 : index
      %c0_8 = arith.constant 0 : index
      %17 = vector.load %arg7[%16, %c0, %c0_8] : memref<1x16x128xf32, #tpu.memory_space<vmem>>, vector<1x16x128xf32>
      %18 = vector.shape_cast %17 : vector<1x16x128xf32> to vector<16x128xf32>
      %c0_9 = arith.constant 0 : index
      %c0_10 = arith.constant 0 : index
      %19 = vector.load %arg10[%c0_9, %c0_10] : memref<16x1xf32, #tpu.memory_space<vmem>>, vector<16x1xf32>
      %20 = vector.broadcast %19 : vector<16x1xf32> to vector<16x128xf32>
      %21 = arith.mulf %18, %20 : vector<16x128xf32>
      %c0_11 = arith.constant 0 : index
      %c0_12 = arith.constant 0 : index
      %22 = vector.load %arg11[%c0_11, %c0_12] : memref<16x1xf32, #tpu.memory_space<vmem>>, vector<16x1xf32>
      %23 = vector.broadcast %22 : vector<16x1xf32> to vector<16x128xf32>
      %24 = arith.addf %21, %23 : vector<16x128xf32>
      %cst = arith.constant 0.000000e+00 : f32
      %25 = vector.broadcast %cst : f32 to vector<16x128xf32>
      %26 = arith.cmpf ogt, %24, %25 : vector<16x128xf32>
      %cst_13 = arith.constant 2.000000e-01 : f32
      %27 = vector.broadcast %cst_13 : f32 to vector<16x128xf32>
      %28 = arith.mulf %27, %24 : vector<16x128xf32>
      %29 = arith.select %26, %24, %28 : vector<16x128xi1>, vector<16x128xf32>
      %30 = arith.truncf %29 : vector<16x128xf32> to vector<16x128xbf16>
      %c0_14 = arith.constant 0 : index
      %c0_15 = arith.constant 0 : index
      %31 = vector.load %arg6[%c0_14, %c0_15] : memref<16x128xbf16, #tpu.memory_space<vmem>>, vector<16x128xbf16>
      tpu.vector_store %arg6[%c0_14, %c0_15], %30 {strides = array<i32>} : memref<16x128xbf16, #tpu.memory_space<vmem>>, vector<16x128xbf16>,
    } else {
    }
    return
  }
  func.func @transform_0(%arg0: i32, %arg1: i32) -> (i32, i32) {
    %c0_i32 = arith.constant 0 : i32
    %c0_i32_0 = arith.constant 0 : i32
    %c0_i32_1 = arith.constant 0 : i32
    return %c0_i32, %c0_i32_0 : i32, i32
  }
  func.func @transform_1(%arg0: i32, %arg1: i32) -> (i32, i32) {
    %c0_i32 = arith.constant 0 : i32
    %c0_i32_0 = arith.constant 0 : i32
    %c0_i32_1 = arith.constant 0 : i32
    return %c0_i32, %c0_i32_0 : i32, i32
  }
  func.func @transform_2(%arg0: i32, %arg1: i32) -> (i32, i32) {
    %c0_i32 = arith.constant 0 : i32
    %c0_i32_0 = arith.constant 0 : i32
    %c0_i32_1 = arith.constant 0 : i32
    return %c0_i32, %c0_i32_0 : i32, i32
  }
  func.func @transform_3(%arg0: i32, %arg1: i32) -> (i32, i32) {
    %c1_i32 = arith.constant 1 : i32
    %0 = arith.subi %c1_i32, %arg0 : i32
    %1 = arith.muli %arg1, %0 : i32
    %c0_i32 = arith.constant 0 : i32
    %c0_i32_0 = arith.constant 0 : i32
    return %c0_i32, %1 : i32, i32
  }
  func.func @transform_4(%arg0: i32, %arg1: i32) -> (i32, i32) {
    %0 = arith.muli %arg0, %arg1 : i32
    %c0_i32 = arith.constant 0 : i32
    %c0_i32_0 = arith.constant 0 : i32
    return %c0_i32, %0 : i32, i32
  }
}

module attributes {stable_mosaic.version = 11 : i64} {
  func.func @_final_conv_sigmoid_kernel(%arg0: i32, %arg1: memref<4x16xbf16, #tpu.memory_space<vmem>>, %arg2: memref<16x128xbf16, #tpu.memory_space<vmem>>, %arg3: memref<1x128xf32, #tpu.memory_space<vmem>>, %arg4: memref<1x128xf32, #tpu.memory_space<vmem>>) attributes {dimension_semantics = [#tpu.dimension_semantics<arbitrary>], iteration_bounds = array<i64: 1>, scalar_prefetch = 0 : i64, scratch_operands = 0 : i64, tpu.core_type = #tpu.core_type<tc>, window_params = [{pipeline_mode = #tpu.pipeline_mode<synchronous>, transform_indices = @transform_0, window_bounds = array<i64: 4, 16>}, {pipeline_mode = #tpu.pipeline_mode<synchronous>, transform_indices = @transform_1, window_bounds = array<i64: 16, 128>}, {pipeline_mode = #tpu.pipeline_mode<synchronous>, transform_indices = @transform_2, window_bounds = array<i64: 1, 128>}, {pipeline_mode = #tpu.pipeline_mode<synchronous>, transform_indices = @transform_3, window_bounds = array<i64: 1, 128>}]} {
    %c0 = arith.constant 0 : index
    %c0_0 = arith.constant 0 : index
    %0 = vector.load %arg1[%c0, %c0_0] : memref<4x16xbf16, #tpu.memory_space<vmem>>, vector<4x16xbf16>
    %c0_1 = arith.constant 0 : index
    %c0_2 = arith.constant 0 : index
    %1 = vector.load %arg2[%c0_1, %c0_2] : memref<16x128xbf16, #tpu.memory_space<vmem>>, vector<16x128xbf16>
    %cst = arith.constant dense<0.000000e+00> : vector<4x128xf32>
    %2 = tpu.matmul %0, %1, %cst {dimension_numbers = #tpu.dot_dimension_numbers<[1], [0], [0], [1], [0, 0, 1, 1], [], []>} : vector<4x16xbf16>, vector<16x128xbf16>, vector<4x128xf32> -> vector<4x128xf32>
    %cst_3 = arith.constant 0.000000e+00 : f32
    %3 = vector.broadcast %cst_3 : f32 to vector<1x128xf32>
    %4 = vector.extract_strided_slice %2 {offsets = [0, 0], sizes = [1, 128], strides = [1, 1]} : vector<4x128xf32> to vector<1x128xf32>
    %5 = arith.addf %3, %4 : vector<1x128xf32>
    %6 = vector.extract_strided_slice %2 {offsets = [1, 0], sizes = [1, 128], strides = [1, 1]} : vector<4x128xf32> to vector<1x128xf32>
    %c127_i32 = arith.constant 127 : i32
    %7 = tpu.dynamic_rotate %6 by %c127_i32 dim 1 : vector<1x128xf32>, i32 -> vector<1x128xf32>
    %8 = arith.addf %5, %7 : vector<1x128xf32>
    %9 = vector.extract_strided_slice %2 {offsets = [2, 0], sizes = [1, 128], strides = [1, 1]} : vector<4x128xf32> to vector<1x128xf32>
    %c120_i32 = arith.constant 120 : i32
    %10 = tpu.dynamic_rotate %9 by %c120_i32 dim 1 : vector<1x128xf32>, i32 -> vector<1x128xf32>
    %11 = arith.addf %8, %10 : vector<1x128xf32>
    %12 = vector.extract_strided_slice %2 {offsets = [3, 0], sizes = [1, 128], strides = [1, 1]} : vector<4x128xf32> to vector<1x128xf32>
    %c119_i32 = arith.constant 119 : i32
    %13 = tpu.dynamic_rotate %12 by %c119_i32 dim 1 : vector<1x128xf32>, i32 -> vector<1x128xf32>
    %14 = arith.addf %11, %13 : vector<1x128xf32>
    %c0_4 = arith.constant 0 : index
    %c0_5 = arith.constant 0 : index
    %15 = vector.load %arg3[%c0_4, %c0_5] : memref<1x128xf32, #tpu.memory_space<vmem>>, vector<1x128xf32>
    tpu.vector_store %arg3[%c0_4, %c0_5], %14 {strides = array<i32>} : memref<1x128xf32, #tpu.memory_space<vmem>>, vector<1x128xf32>,
    %cst_6 = arith.constant 0.000000e+00 : f32
    %16 = vector.broadcast %cst_6 : f32 to vector<1x128xf32>
    %17 = arith.subf %16, %14 : vector<1x128xf32>
    %18 = math.exp %17 : vector<1x128xf32>
    %cst_7 = arith.constant 1.000000e+00 : f32
    %19 = vector.broadcast %cst_7 : f32 to vector<1x128xf32>
    %20 = arith.addf %19, %18 : vector<1x128xf32>
    %21 = tpu.reciprocal %20 {approx = true} : vector<1x128xf32> -> vector<1x128xf32>
    %cst_8 = arith.constant 0.000000e+00 : f32
    %cst_9 = arith.constant 1.000000e+00 : f32
    %22 = vector.broadcast %cst_8 : f32 to vector<1x128xf32>
    %23 = arith.maximumf %22, %21 : vector<1x128xf32>
    %24 = vector.broadcast %cst_9 : f32 to vector<1x128xf32>
    %25 = arith.minimumf %24, %23 : vector<1x128xf32>
    %c0_10 = arith.constant 0 : index
    %c0_11 = arith.constant 0 : index
    %26 = vector.load %arg4[%c0_10, %c0_11] : memref<1x128xf32, #tpu.memory_space<vmem>>, vector<1x128xf32>
    tpu.vector_store %arg4[%c0_10, %c0_11], %25 {strides = array<i32>} : memref<1x128xf32, #tpu.memory_space<vmem>>, vector<1x128xf32>,
    return
  }
  func.func @transform_0(%arg0: i32) -> (i32, i32) {
    %c0_i32 = arith.constant 0 : i32
    %c0_i32_0 = arith.constant 0 : i32
    %c0_i32_1 = arith.constant 0 : i32
    return %c0_i32, %c0_i32_0 : i32, i32
  }
  func.func @transform_1(%arg0: i32) -> (i32, i32) {
    %c0_i32 = arith.constant 0 : i32
    %c0_i32_0 = arith.constant 0 : i32
    %c0_i32_1 = arith.constant 0 : i32
    return %c0_i32, %c0_i32_0 : i32, i32
  }
  func.func @transform_2(%arg0: i32) -> (i32, i32) {
    %c0_i32 = arith.constant 0 : i32
    %c0_i32_0 = arith.constant 0 : i32
    %c0_i32_1 = arith.constant 0 : i32
    return %c0_i32, %c0_i32_0 : i32, i32
  }
  func.func @transform_3(%arg0: i32) -> (i32, i32) {
    %c0_i32 = arith.constant 0 : i32
    %c0_i32_0 = arith.constant 0 : i32
    %c0_i32_1 = arith.constant 0 : i32
    return %c0_i32, %c0_i32_0 : i32, i32
  }
}

</mosaic_0001>

<llo_original>
// kernel: netd_forward.4
$region0: #{netd_forward.4}
  #allocation0 [shape = 'u32[]', space=smem, size = 0x4, offset = 0x4, fixed_abs, tag = 'smem constant byte address 0x4 - core index']
  #allocation1 [shape = 'u32[144,128]{1,0:T(1,128)}', space=vmem, size = 0x12000, scoped, tag = 'internal scratch']
  %s0 = inlined_call_operand.vmem [shape: bf16[8,12], index: 0, kind: input, shape index: {}]
  %s1 = inlined_call_operand.vmem [shape: bf16[12,512], index: 1, kind: input, shape index: {}]
  %s2 = inlined_call_operand.vmem [shape: bf16[8,512], index: 2, kind: output, shape index: {}]
  %s3 = sld [smem:[#allocation0]]
  $region18: #{netd_forward.4} parent=0
    _
  %s5 = ssub.s32 1, %s3
  %s6 = scalar_select 0, %s5, %s3
  // Predicated region
  $region2: #{netd_forward.4} parent=0 // pred_check
    _
  $region3: #{netd_forward.4} parent=0 // pred_check_branch
    %8 = sbr.rel (0) target = $region5
  $region4: #{netd_forward.4} parent=0 // pred_region
    _
  $region5: #{netd_forward.4} parent=0 // pred_fallthru
    _
  // Predicated region
  $region6: #{netd_forward.4} parent=0 // pred_check
    _
  $region7: #{netd_forward.4} parent=0 // pred_check_branch
    %10 = sbr.rel (0) target = $region9
  $region8: #{netd_forward.4} parent=0 // pred_region
    _
  $region9: #{netd_forward.4} parent=0 // pred_fallthru
    _
  %v12 = vld [vmem:[%s0] sm:$0xf]
  %v13 = vld [vmem:[%s1] sm:$0xff]
  %v14 = vld [vmem:[%s1 + $0x8] sm:$0xff]
  %v15 = vld [vmem:[%s1 + $0x10] sm:$0x33]
  %v16 = vld [vmem:[%s1 + $0x18] sm:$0x33]
  %v21 = vunpack.c.l.b16 %v13
  %v22 = vunpack.c.h.b16 %v13
  %v23 = vunpack.c.l.b16 %v14
  %v24 = vunpack.c.h.b16 %v14
  %v25 = vunpack.c.l.b16 %v15
  %v26 = vunpack.c.h.b16 %v15
  %v27 = vunpack.c.l.b16 %v16
  %v28 = vunpack.c.h.b16 %v16
  %v29 = vpack.c.b16 %v25, %v21
  %v30 = vpack.c.b16 %v26, %v22
  %v31 = vpack.c.b16 %v27, %v23
  %v32 = vpack.c.b16 %v28, %v24
  %vm33 = vcmask 97280
  %v35 = vsel %vm33, %v12, 0
  %vm37 = vcmask 1045504
  %v39 = vsel %vm37, %v29, 0
  %v42 = vsel %vm37, %v30, 0
  %v45 = vsel %vm37, %v31, 0
  %v48 = vsel %vm37, %v32, 0
  %50 = vmatprep.subr.bf16.mxu0 0
  %51 = vmatpush1.bf16.msra.mxu0 0
  %52 = vmatprep.subr.bf16.mxu0 0
  %53 = vmatpush1.bf16.msra.mxu0 0
  %54 = vmatprep.subr.bf16.mxu0 0
  %55 = vmatpush1.bf16.msra.mxu0 0
  %56 = vmatprep.subr.bf16.mxu0 0
  %57 = vmatpush1.bf16.msra.mxu0 0
  %58 = vmatprep.subr.bf16.mxu0 0
  %59 = vmatpush1.bf16.msra.mxu0 0
  %60 = vmatprep.subr.bf16.mxu0 0
  %61 = vmatpush1.bf16.msra.mxu0 0
  %62 = vmatprep.subr.bf16.mxu0 0
  %63 = vmatpush1.bf16.msra.mxu0 0
  %64 = vmatprep.subr.bf16.mxu0 %v42
  %65 = vmatpush1.bf16.msra.mxu0 %v39
  %66 = vmatprep.subr.bf16.mxu0 0
  %67 = vmatpush2.bf16.msra.mxu0 0
  %68 = vmatprep.subr.bf16.mxu0 0
  %69 = vmatpush2.bf16.msra.mxu0 0
  %70 = vmatprep.subr.bf16.mxu0 0
  %71 = vmatpush2.bf16.msra.mxu0 0
  %72 = vmatprep.subr.bf16.mxu0 0
  %73 = vmatpush2.bf16.msra.mxu0 0
  %74 = vmatprep.subr.bf16.mxu0 0
  %75 = vmatpush2.bf16.msra.mxu0 0
  %76 = vmatprep.subr.bf16.mxu0 0
  %77 = vmatpush2.bf16.msra.mxu0 0
  %78 = vmatprep.subr.bf16.mxu0 0
  %79 = vmatpush2.bf16.msra.mxu0 0
  %80 = vmatprep.subr.bf16.mxu0 0
  %81 = vmatpush2.bf16.msra.mxu0 0
  %82 = vmatprep.mubr.bf16.mxu0 0
  %83 = vmatmul.mubr.bf16.gmra.mxu0 %v35
  %v84 = vpop.f32.mrf.mxu0
  %v85 = vadd.f32 0.0, %v84
  %v86 = vpop.f32.mrf.mxu0
  %v87 = vadd.f32 0.0, %v86
  %v88 = vpop.f32.mrf.mxu0
  %v89 = vpop.f32.mrf.mxu0
  %90 = vdwg.mxu0
  %91 = vmatprep.subr.bf16.mxu0 0
  %92 = vmatpush1.bf16.msra.mxu0 0
  %93 = vmatprep.subr.bf16.mxu0 0
  %94 = vmatpush1.bf16.msra.mxu0 0
  %95 = vmatprep.subr.bf16.mxu0 0
  %96 = vmatpush1.bf16.msra.mxu0 0
  %97 = vmatprep.subr.bf16.mxu0 0
  %98 = vmatpush1.bf16.msra.mxu0 0
  %99 = vmatprep.subr.bf16.mxu0 0
  %100 = vmatpush1.bf16.msra.mxu0 0
  %101 = vmatprep.subr.bf16.mxu0 0
  %102 = vmatpush1.bf16.msra.mxu0 0
  %103 = vmatprep.subr.bf16.mxu0 0
  %104 = vmatpush1.bf16.msra.mxu0 0
  %105 = vmatprep.subr.bf16.mxu0 %v48
  %106 = vmatpush1.bf16.msra.mxu0 %v45
  %107 = vmatprep.subr.bf16.mxu0 0
  %108 = vmatpush2.bf16.msra.mxu0 0
  %109 = vmatprep.subr.bf16.mxu0 0
  %110 = vmatpush2.bf16.msra.mxu0 0
  %111 = vmatprep.subr.bf16.mxu0 0
  %112 = vmatpush2.bf16.msra.mxu0 0
  %113 = vmatprep.subr.bf16.mxu0 0
  %114 = vmatpush2.bf16.msra.mxu0 0
  %115 = vmatprep.subr.bf16.mxu0 0
  %116 = vmatpush2.bf16.msra.mxu0 0
  %117 = vmatprep.subr.bf16.mxu0 0
  %118 = vmatpush2.bf16.msra.mxu0 0
  %119 = vmatprep.subr.bf16.mxu0 0
  %120 = vmatpush2.bf16.msra.mxu0 0
  %121 = vmatprep.subr.bf16.mxu0 0
  %122 = vmatpush2.bf16.msra.mxu0 0
  %123 = vmatprep.mubr.bf16.mxu0 0
  %124 = vmatmul.mubr.bf16.gmra.mxu0 %v35
  %v125 = vpop.f32.mrf.mxu0
  %v126 = vadd.f32 0.0, %v125
  %v127 = vpop.f32.mrf.mxu0
  %v128 = vadd.f32 0.0, %v127
  %v129 = vpop.f32.mrf.mxu0
  %v130 = vpop.f32.mrf.mxu0
  %131 = vdwg.mxu0
  %vm132 = vcmp.gt.f32.partialorder %v85, 0.0
  %vm133 = vcmp.gt.f32.partialorder %v87, 0.0
  %vm134 = vcmp.gt.f32.partialorder %v126, 0.0
  %vm135 = vcmp.gt.f32.partialorder %v128, 0.0
  %v136 = vmul.f32 %v85, 0.2
  %v137 = vmul.f32 %v87, 0.2
  %v138 = vmul.f32 %v126, 0.2
  %v139 = vmul.f32 %v128, 0.2
  %v140 = vsel %vm132, %v85, %v136
  %v141 = vsel %vm133, %v87, %v137
  %v142 = vsel %vm134, %v126, %v138
  %v143 = vsel %vm135, %v128, %v139
  %v144 = vpack.c.bf16 %v140, %v140
  %v145 = vpack.c.bf16 %v141, %v141
  %v146 = vpack.c.bf16 %v142, %v142
  %v147 = vpack.c.bf16 %v143, %v143
  %v152 = vunpack.c.l.b16 %v144
  %v153 = vunpack.c.l.b16 %v145
  %v154 = vunpack.c.l.b16 %v146
  %v155 = vunpack.c.l.b16 %v147
  %v156 = vpack.c.b16 %v153, %v152
  %v157 = vpack.c.b16 %v155, %v154
  %160 = vst [vmem:[%s2] sm:$0xff] %v156
  %161 = vst [vmem:[%s2 + $0x8] sm:$0xff] %v157
  // Predicated region
  $region10: #{netd_forward.4} parent=0 // pred_check
    _
  $region11: #{netd_forward.4} parent=0 // pred_check_branch
    %163 = sbr.rel (0) target = $region13
  $region12: #{netd_forward.4} parent=0 // pred_region
    _
  $region13: #{netd_forward.4} parent=0 // pred_fallthru
    _
  // Predicated region
  $region14: #{netd_forward.4} parent=0 // pred_check
    _
  $region15: #{netd_forward.4} parent=0 // pred_check_branch
    %165 = sbr.rel (0) target = $region17
  $region16: #{netd_forward.4} parent=0 // pred_region
    _
  $region17: #{netd_forward.4} parent=0 // pred_fallthru
    _

// kernel: netd_forward.5
$region0: #{netd_forward.5}
  #allocation0 [shape = 'u32[]', space=smem, size = 0x4, offset = 0x4, fixed_abs, tag = 'smem constant byte address 0x4 - core index']
  #allocation1 [shape = 'u32[144,128]{1,0:T(1,128)}', space=vmem, size = 0x12000, scoped, tag = 'internal scratch']
  #allocation2 [shape = 'f32[1,8,768]{2,1,0:T(8,128)}', space=vmem, size = 0x6000, scoped, tag = 'scratch operand']
  #allocation3 [shape = 'f32[8,1]{1,0:T(8,128)}', space=vmem, size = 0x1000, scoped, tag = 'scratch operand']
  #allocation4 [shape = 'f32[8,1]{1,0:T(8,128)}', space=vmem, size = 0x1000, scoped, tag = 'scratch operand']
  #allocation5 [shape = 'f32[8,1]{1,0:T(8,128)}', space=vmem, size = 0x1000, scoped, tag = 'scratch operand']
  #allocation6 [shape = 'f32[8,1]{1,0:T(8,128)}', space=vmem, size = 0x1000, scoped, tag = 'scratch operand']
  %s0 = inlined_call_operand.vmem [shape: bf16[72,8], index: 0, kind: input, shape index: {}]
  %s1 = inlined_call_operand.vmem [shape: f32[8,1], index: 1, kind: input, shape index: {}]
  %s2 = inlined_call_operand.vmem [shape: f32[8,1], index: 2, kind: input, shape index: {}]
  %s3 = inlined_call_operand.vmem [shape: f32[1,768], index: 3, kind: input, shape index: {}]
  %s4 = inlined_call_operand.vmem [shape: bf16[8,768], index: 4, kind: input, shape index: {}]
  %s5 = inlined_call_operand.vmem [shape: bf16[8,768], index: 5, kind: output, shape index: {}]
  %s6 = sld [smem:[#allocation0]]
  $region69: #{netd_forward.5} parent=0
    _
  %s8 = ssub.s32 1, %s6
  %s9 = scalar_select 0, %s8, %s6
  loop: start=0, step=1, limit=4
  $region2: #{netd_forward.5} parent=0 // loop_pre_header
    _
  $region3: #{netd_forward.5} parent=0 // loop_header
    %s11 = sphi 0, %s15
    %p12 = scmp.ge.s32.totalorder %s11, 4
    %s18 = sphi 0, %s30
    %s19 = sphi 0, %s26
    %s20 = sphi 0, %s18
    %s21 = sphi 0, %s19
    %s22 = sphi 0, %s20
    %s23 = sphi 0, %s21
    %s31 = sphi 0, %s31
    %s33 = sphi 0, %s31
    %s34 = sphi 0, %s33
    %s48 = sphi 0, %s34
    %s52 = sphi 0, %s52
    %s54 = sphi 0, %s52
    %s55 = sphi 0, %s54
    %s69 = sphi 0, %s55
    %s73 = sphi 0, %s73
    %s75 = sphi 0, %s73
    %s76 = sphi 0, %s75
    %s90 = sphi 0, %s76
    %s100 = sphi 0, %s102
    %s103 = sphi 0, %s100
    %s104 = sphi 0, %s103
    %s120 = sphi 0, %s104
    %s130 = sphi 0, %s132
    %s133 = sphi 0, %s130
    %s134 = sphi 0, %s133
    %s150 = sphi 0, %s134
    %s158 = sphi 0, %s160
    %s161 = sphi 0, %s158
    %s162 = sphi 0, %s161
    %s178 = sphi 0, %s162
  $region4: #{netd_forward.5} parent=0 // loop_header_branch
    %14 = sbr.rel (%p12) target = $region8
  $region5: #{netd_forward.5} parent=0 // loop_body
    %s16 = ssub.s32 %s11, 1
    %s17 = ssub.s32 %s11, 2
    %s24 = sadd.s32 1, %s19
    %p25 = scmp.ge.s32.totalorder %s24, 1
    %s26 = scalar_select %p25, 0, %s24
    %s27 = sadd.s32 1, %s18
    %s28 = scalar_select %p25, %s27, %s18
    %p29 = scmp.ge.s32.totalorder %s28, 2
    %s30 = scalar_select %p29, 0, %s28
    %s32 = sadd.s32 %s31, 1
    %p35 = scmp.eq.s32.totalorder %s11, 1
    %p36 = scmp.ne.s32.totalorder %s31, %s33
    %p37 = scmp.eq.s32.totalorder %s11, 0
    %p38 = por %p36, %p37
    %p39 = scmp.ne.s32.totalorder %s31, %s33
    %p40 = scmp.eq.s32.totalorder %s16, 1
    %p41 = por %p39, %p40
    %p42 = scmp.ne.s32.totalorder %s33, %s34
    %p43 = scmp.eq.s32.totalorder %s16, 0
    %p44 = por %p42, %p43
    %p45 = scmp.ne.s32.totalorder %s33, %s34
    %p46 = scmp.eq.s32.totalorder %s17, 1
    %p47 = por %p45, %p46
    %p49 = scmp.ne.s32.totalorder %s34, %s48
    %p50 = scmp.eq.s32.totalorder %s17, 0
    %p51 = por %p49, %p50
    %s53 = sadd.s32 %s52, 1
    %p56 = scmp.eq.s32.totalorder %s11, 1
    %p57 = scmp.ne.s32.totalorder %s52, %s54
    %p58 = scmp.eq.s32.totalorder %s11, 0
    %p59 = por %p57, %p58
    %p60 = scmp.ne.s32.totalorder %s52, %s54
    %p61 = scmp.eq.s32.totalorder %s16, 1
    %p62 = por %p60, %p61
    %p63 = scmp.ne.s32.totalorder %s54, %s55
    %p64 = scmp.eq.s32.totalorder %s16, 0
    %p65 = por %p63, %p64
    %p66 = scmp.ne.s32.totalorder %s54, %s55
    %p67 = scmp.eq.s32.totalorder %s17, 1
    %p68 = por %p66, %p67
    %p70 = scmp.ne.s32.totalorder %s55, %s69
    %p71 = scmp.eq.s32.totalorder %s17, 0
    %p72 = por %p70, %p71
    %s74 = sadd.s32 %s73, 1
    %p77 = scmp.eq.s32.totalorder %s11, 1
    %p78 = scmp.ne.s32.totalorder %s73, %s75
    %p79 = scmp.eq.s32.totalorder %s11, 0
    %p80 = por %p78, %p79
    %p81 = scmp.ne.s32.totalorder %s73, %s75
    %p82 = scmp.eq.s32.totalorder %s16, 1
    %p83 = por %p81, %p82
    %p84 = scmp.ne.s32.totalorder %s75, %s76
    %p85 = scmp.eq.s32.totalorder %s16, 0
    %p86 = por %p84, %p85
    %p87 = scmp.ne.s32.totalorder %s75, %s76
    %p88 = scmp.eq.s32.totalorder %s17, 1
    %p89 = por %p87, %p88
    %p91 = scmp.ne.s32.totalorder %s76, %s90
    %p92 = scmp.eq.s32.totalorder %s17, 0
    %p93 = por %p91, %p92
    %s94 = ssub.s32 1, %s18
    %s95 = smul.u32 %s19, %s94
    %s96 = ssub.s32 1, %s30
    %s97 = smul.u32 %s26, %s96
    %s98 = ssub.s32 %s95, %s97
    %p99 = scmp.eq.s32.totalorder %s98, 0
    %s101 = sadd.s32 %s100, 1
    %s102 = scalar_select %p99, %s100, %s101
    %p105 = pneg %p99
    %p106 = scmp.eq.s32.totalorder %s11, 1
    %p107 = por %p105, %p106
    %p108 = scmp.ne.s32.totalorder %s100, %s103
    %p109 = scmp.eq.s32.totalorder %s11, 0
    %p110 = por %p108, %p109
    %p111 = scmp.ne.s32.totalorder %s100, %s103
    %p112 = scmp.eq.s32.totalorder %s16, 1
    %p113 = por %p111, %p112
    %p114 = scmp.ne.s32.totalorder %s103, %s104
    %p115 = scmp.eq.s32.totalorder %s16, 0
    %p116 = por %p114, %p115
    %p117 = scmp.ne.s32.totalorder %s103, %s104
    %p118 = scmp.eq.s32.totalorder %s17, 1
    %p119 = por %p117, %p118
    %p121 = scmp.ne.s32.totalorder %s104, %s120
    %p122 = scmp.eq.s32.totalorder %s17, 0
    %p123 = por %p121, %p122
    %s124 = ssub.s32 1, %s18
    %s125 = smul.u32 %s19, %s124
    %s126 = ssub.s32 1, %s30
    %s127 = smul.u32 %s26, %s126
    %s128 = ssub.s32 %s125, %s127
    %p129 = scmp.eq.s32.totalorder %s128, 0
    %s131 = sadd.s32 %s130, 1
    %s132 = scalar_select %p129, %s130, %s131
    %p135 = pneg %p129
    %p136 = scmp.eq.s32.totalorder %s11, 1
    %p137 = por %p135, %p136
    %p138 = scmp.ne.s32.totalorder %s130, %s133
    %p139 = scmp.eq.s32.totalorder %s11, 0
    %p140 = por %p138, %p139
    %p141 = scmp.ne.s32.totalorder %s130, %s133
    %p142 = scmp.eq.s32.totalorder %s16, 1
    %p143 = por %p141, %p142
    %p144 = scmp.ne.s32.totalorder %s133, %s134
    %p145 = scmp.eq.s32.totalorder %s16, 0
    %p146 = por %p144, %p145
    %p147 = scmp.ne.s32.totalorder %s133, %s134
    %p148 = scmp.eq.s32.totalorder %s17, 1
    %p149 = por %p147, %p148
    %p151 = scmp.ne.s32.totalorder %s134, %s150
    %p152 = scmp.eq.s32.totalorder %s17, 0
    %p153 = por %p151, %p152
    %s154 = smul.u32 %s18, %s19
    %s155 = smul.u32 %s30, %s26
    %s156 = ssub.s32 %s154, %s155
    %p157 = scmp.eq.s32.totalorder %s156, 0
    %s159 = sadd.s32 %s158, 1
    %s160 = scalar_select %p157, %s158, %s159
    %p163 = pneg %p157
    %p164 = scmp.eq.s32.totalorder %s11, 1
    %p165 = por %p163, %p164
    %p166 = scmp.ne.s32.totalorder %s158, %s161
    %p167 = scmp.eq.s32.totalorder %s11, 0
    %p168 = por %p166, %p167
    %p169 = scmp.ne.s32.totalorder %s158, %s161
    %p170 = scmp.eq.s32.totalorder %s16, 1
    %p171 = por %p169, %p170
    %p172 = scmp.ne.s32.totalorder %s161, %s162
    %p173 = scmp.eq.s32.totalorder %s16, 0
    %p174 = por %p172, %p173
    %p175 = scmp.ne.s32.totalorder %s161, %s162
    %p176 = scmp.eq.s32.totalorder %s17, 1
    %p177 = por %p175, %p176
    %p179 = scmp.ne.s32.totalorder %s162, %s178
    %p180 = scmp.eq.s32.totalorder %s17, 0
    %p181 = por %p179, %p180
    %p182 = scmp.le.s32.totalorder 1, %s11
    %p183 = scmp.lt.s32.totalorder %s11, 3
    %p184 = pnand %p182, %p183
    %p185 = pneg %p184
    // Predicated region
    $region9: #{netd_forward.5} parent=5 // pred_check
      _
    $region10: #{netd_forward.5} parent=5 // pred_check_branch
      %187 = sbr.rel (%p184) target = $region12
    $region11: #{netd_forward.5} parent=5 // pred_region
      %s188 = ssub.s32 %s11, 1
      // Predicated region
      $region13: #{netd_forward.5} parent=11 // pred_check
        %p189 = pneg %p44
      $region14: #{netd_forward.5} parent=11 // pred_check_branch
        %191 = sbr.rel (%p189) target = $region16
      $region15: #{netd_forward.5} parent=11 // pred_region
        _
      $region16: #{netd_forward.5} parent=11 // pred_fallthru
        _
      // Predicated region
      $region17: #{netd_forward.5} parent=11 // pred_check
        %p192 = pneg %p65
      $region18: #{netd_forward.5} parent=11 // pred_check_branch
        %194 = sbr.rel (%p192) target = $region20
      $region19: #{netd_forward.5} parent=11 // pred_region
        _
      $region20: #{netd_forward.5} parent=11 // pred_fallthru
        _
      // Predicated region
      $region21: #{netd_forward.5} parent=11 // pred_check
        %p195 = pneg %p86
      $region22: #{netd_forward.5} parent=11 // pred_check_branch
        %197 = sbr.rel (%p195) target = $region24
      $region23: #{netd_forward.5} parent=11 // pred_region
        _
      $region24: #{netd_forward.5} parent=11 // pred_fallthru
        _
    $region12: #{netd_forward.5} parent=5 // pred_fallthru
      _
    %p198 = scmp.lt.s32.totalorder %s11, 2
    // Predicated region
    $region25: #{netd_forward.5} parent=5 // pred_check
      %p199 = pneg %p198
    $region26: #{netd_forward.5} parent=5 // pred_check_branch
      %201 = sbr.rel (%p199) target = $region28
    $region27: #{netd_forward.5} parent=5 // pred_region
      // Predicated region
      $region29: #{netd_forward.5} parent=27 // pred_check
        %p202 = pneg %p110
      $region30: #{netd_forward.5} parent=27 // pred_check_branch
        %204 = sbr.rel (%p202) target = $region32
      $region31: #{netd_forward.5} parent=27 // pred_region
        %s205 = ssub.s32 1, %s18
        %s206 = smul.u32 %s19, %s205
        %s207 = smul.u32 6, %s206
        %p208 = scmp.lt.s32.totalorder %s207, 5
        %s209 = scalar_select %p208, %s207, 5
        %s210 = scalar_lea.vmem %s3, %s209
        %s211 = ssub.s32 1, %s18
        %s212 = smul.u32 %s19, %s211
        %s213 = smul.u32 6, %s212
      $region32: #{netd_forward.5} parent=27 // pred_fallthru
        _
      // Predicated region
      $region33: #{netd_forward.5} parent=27 // pred_check
        %p214 = pneg %p140
      $region34: #{netd_forward.5} parent=27 // pred_check_branch
        %216 = sbr.rel (%p214) target = $region36
      $region35: #{netd_forward.5} parent=27 // pred_region
        %s217 = ssub.s32 1, %s18
        %s218 = smul.u32 %s19, %s217
        %s219 = smul.u32 6, %s218
        %p220 = scmp.lt.s32.totalorder %s219, 5
        %s221 = scalar_select %p220, %s219, 5
        %s222 = smul.addr %s221, 4
        %s223 = scalar_lea.vmem %s4, %s222
        %s224 = ssub.s32 1, %s18
        %s225 = smul.u32 %s19, %s224
        %s226 = smul.u32 6, %s225
      $region36: #{netd_forward.5} parent=27 // pred_fallthru
        _
    $region28: #{netd_forward.5} parent=5 // pred_fallthru
      _
    %p227 = scmp.le.s32.totalorder 1, %s11
    %p228 = scmp.lt.s32.totalorder %s11, 3
    %p229 = pnand %p227, %p228
    %p230 = pneg %p229
    // Predicated region
    $region37: #{netd_forward.5} parent=5 // pred_check
      _
    $region38: #{netd_forward.5} parent=5 // pred_check_branch
      %232 = sbr.rel (%p229) target = $region40
    $region39: #{netd_forward.5} parent=5 // pred_region
      %s233 = ssub.s32 %s11, 1
      %p234 = pneg %p44
      %p235 = pneg %p41
      %p236 = pneg %p65
      %p237 = pneg %p62
      %p238 = pneg %p86
      %p239 = pneg %p83
      %s240 = ssub.s32 1, %s20
      %s241 = smul.u32 %s21, %s240
      %s242 = smul.u32 6, %s241
      %p243 = scmp.lt.s32.totalorder %s242, 5
      %s244 = scalar_select %p243, %s242, 5
      %s245 = scalar_lea.vmem %s3, %s244
      %p246 = pneg %p116
      %p247 = pneg %p113
      %s248 = ssub.s32 1, %s20
      %s249 = smul.u32 %s21, %s248
      %s250 = smul.u32 6, %s249
      %p251 = scmp.lt.s32.totalorder %s250, 5
      %s252 = scalar_select %p251, %s250, 5
      %s253 = smul.addr %s252, 4
      %s254 = scalar_lea.vmem %s4, %s253
      %p255 = pneg %p146
      %p256 = pneg %p143
      %p257 = pneg %p174
      %p258 = pneg %p171
      %s259 = smul.u32 %s20, %s21
      %s260 = smul.u32 6, %s259
      %p261 = scmp.lt.s32.totalorder %s260, 5
      %s262 = scalar_select %p261, %s260, 5
      %s263 = smul.addr %s262, 4
      %s264 = scalar_lea.vmem %s5, %s263
      %s265 = ssub.s32 1, %s20
      %s266 = smul.u32 %s21, %s265
      %s267 = smul.u32 6, %s266
      %p268 = scmp.lt.s32.totalorder %s267, 5
      %s269 = scalar_select %p268, %s267, 5
      %s270 = scalar_lea.vmem %s3, %s269
      %s271 = ssub.s32 1, %s20
      %s272 = smul.u32 %s21, %s271
      %s273 = smul.u32 6, %s272
      %s274 = ssub.s32 1, %s20
      %s275 = smul.u32 %s21, %s274
      %s276 = smul.u32 6, %s275
      %p277 = scmp.lt.s32.totalorder %s276, 5
      %s278 = scalar_select %p277, %s276, 5
      %s279 = smul.addr %s278, 4
      %s280 = scalar_lea.vmem %s4, %s279
      %s281 = ssub.s32 1, %s20
      %s282 = smul.u32 %s21, %s281
      %s283 = smul.u32 6, %s282
      %s284 = smul.u32 %s20, %s21
      %s285 = smul.u32 6, %s284
      %p286 = scmp.lt.s32.totalorder %s285, 5
      %s287 = scalar_select %p286, %s285, 5
      %s288 = smul.addr %s287, 4
      %s289 = scalar_lea.vmem %s5, %s288
      %s290 = smul.u32 %s20, %s21
      %s291 = smul.u32 6, %s290
      %p293 = scmp.eq.s32.totalorder %s20, 0
      %p294 = scmp.eq.s32.totalorder %s21, 0
      %p295 = pnand %p293, %p294
      %p296 = pneg %p295
      // Predicated region
      $region41: #{netd_forward.5} parent=39 // pred_check
        _
      $region42: #{netd_forward.5} parent=39 // pred_check_branch
        %298 = sbr.rel (%p295) target = $region44
      $region43: #{netd_forward.5} parent=39 // pred_region
        %vm299 = vcmask 7168
        %300 = vst.msk [vmem:[#allocation3] sm:$0xff] %vm299, 0.0
        %301 = vst.msk [vmem:[#allocation4] sm:$0xff] %vm299, 0.0
      $region44: #{netd_forward.5} parent=39 // pred_fallthru
        _
      // Predicated region
      $region45: #{netd_forward.5} parent=39 // pred_check
        %p302 = pneg %p293
      $region46: #{netd_forward.5} parent=39 // pred_check_branch
        %304 = sbr.rel (%p302) target = $region48
      $region47: #{netd_forward.5} parent=39 // pred_region
        %v305 = vld [vmem:[%s280] sm:$0xff]
        %v306 = vld [vmem:[%s280 + $0x8] sm:$0xff]
        %v307 = vld [vmem:[%s280 + $0x10] sm:$0xff]
        %v308 = vld [vmem:[%s0] sm:$0xf]
        %v309 = vld [vmem:[%s0 + $0x4] sm:$0xf]
        %v310 = vld [vmem:[%s0 + $0x8] sm:$0xf]
        %v311 = vld [vmem:[%s0 + $0xc] sm:$0xf]
        %v312 = vld [vmem:[%s0 + $0x10] sm:$0xf]
        %v313 = vld [vmem:[%s0 + $0x14] sm:$0xf]
        %v314 = vld [vmem:[%s0 + $0x18] sm:$0xf]
        %v315 = vld [vmem:[%s0 + $0x1c] sm:$0xf]
        %v316 = vld [vmem:[%s0 + $0x20] sm:$0xf]
        %v326 = vunpack.c.l.b16 %v308
        %v327 = vunpack.c.l.b16 %v309
        %v328 = vunpack.c.l.b16 %v310
        %v329 = vunpack.c.l.b16 %v311
        %v330 = vunpack.c.l.b16 %v312
        %v331 = vunpack.c.l.b16 %v313
        %v332 = vunpack.c.l.b16 %v314
        %v333 = vunpack.c.l.b16 %v315
        %v334 = vunpack.c.l.b16 %v316
        %v335 = vpack.c.b16 %v327, %v326
        %v336 = vpack.c.b16 %v329, %v328
        %v337 = vpack.c.b16 %v331, %v330
        %v338 = vpack.c.b16 %v333, %v332
        %v339 = vpack.c.b16 %v334, %v334
        %v343 = vunpack.c.l.b16 %v305
        %v344 = vunpack.c.h.b16 %v305
        %v345 = vunpack.c.l.b16 %v306
        %v346 = vunpack.c.h.b16 %v306
        %v347 = vunpack.c.l.b16 %v307
        %v348 = vunpack.c.h.b16 %v307
        %v349 = vpack.c.b16 %v343, %v343
        %v350 = vpack.c.b16 %v344, %v344
        %v351 = vpack.c.b16 %v345, %v345
        %v352 = vpack.c.b16 %v346, %v346
        %v353 = vpack.c.b16 %v347, %v347
        %v354 = vpack.c.b16 %v348, %v348
        %vm355 = vcmask 64512
        %v357 = vsel %vm355, %v335, 0
        %v360 = vsel %vm355, %v336, 0
        %v363 = vsel %vm355, %v337, 0
        %v366 = vsel %vm355, %v338, 0
        %v369 = vsel %vm355, %v339, 0
        %vm371 = vcmask 1043456
        %v373 = vsel %vm371, %v349, 0
        %v376 = vsel %vm371, %v350, 0
        %v379 = vsel %vm371, %v351, 0
        %v382 = vsel %vm371, %v352, 0
        %v385 = vsel %vm371, %v353, 0
        %v388 = vsel %vm371, %v354, 0
        %390 = vmatprep.subr.bf16.mxu0 0
        %391 = vmatpush1.bf16.msra.mxu0 0
        %392 = vmatprep.subr.bf16.mxu0 0
        %393 = vmatpush1.bf16.msra.mxu0 0
        %394 = vmatprep.subr.bf16.mxu0 0
        %395 = vmatpush1.bf16.msra.mxu0 0
        %396 = vmatprep.subr.bf16.mxu0 0
        %397 = vmatpush1.bf16.msra.mxu0 0
        %398 = vmatprep.subr.bf16.mxu0 0
        %399 = vmatpush1.bf16.msra.mxu0 0
        %400 = vmatprep.subr.bf16.mxu0 0
        %401 = vmatpush1.bf16.msra.mxu0 0
        %402 = vmatprep.subr.bf16.mxu0 0
        %403 = vmatpush1.bf16.msra.mxu0 0
        %404 = vmatprep.subr.bf16.mxu0 %v376
        %405 = vmatpush1.bf16.msra.mxu0 %v373
        %406 = vmatprep.subr.bf16.mxu0 0
        %407 = vmatpush2.bf16.msra.mxu0 0
        %408 = vmatprep.subr.bf16.mxu0 0
        %409 = vmatpush2.bf16.msra.mxu0 0
        %410 = vmatprep.subr.bf16.mxu0 0
        %411 = vmatpush2.bf16.msra.mxu0 0
        %412 = vmatprep.subr.bf16.mxu0 0
        %413 = vmatpush2.bf16.msra.mxu0 0
        %414 = vmatprep.subr.bf16.mxu0 0
        %415 = vmatpush2.bf16.msra.mxu0 0
        %416 = vmatprep.subr.bf16.mxu0 0
        %417 = vmatpush2.bf16.msra.mxu0 0
        %418 = vmatprep.subr.bf16.mxu0 0
        %419 = vmatpush2.bf16.msra.mxu0 0
        %420 = vmatprep.subr.bf16.mxu0 0
        %421 = vmatpush2.bf16.msra.mxu0 0
        %422 = vmatprep.mubr.bf16.mxu0 0
        %423 = vmatmul.mubr.bf16.gmra.mxu0 %v357
        %v424 = vpop.f32.mrf.mxu0
        %v425 = vadd.f32 0.0, %v424
        %v426 = vpop.f32.mrf.mxu0
        %v427 = vadd.f32 0.0, %v426
        %v428 = vpop.f32.mrf.mxu0
        %v429 = vadd.f32 0.0, %v428
        %v430 = vpop.f32.mrf.mxu0
        %v431 = vadd.f32 0.0, %v430
        %432 = vmatprep.mubr.bf16.mxu0 0
        %433 = vmatmul.mubr.bf16.gmra.mxu0 %v360
        %v434 = vpop.f32.mrf.mxu0
        %v435 = vadd.f32 0.0, %v434
        %v436 = vpop.f32.mrf.mxu0
        %v437 = vadd.f32 0.0, %v436
        %v438 = vpop.f32.mrf.mxu0
        %v439 = vadd.f32 0.0, %v438
        %v440 = vpop.f32.mrf.mxu0
        %v441 = vadd.f32 0.0, %v440
        %442 = vmatprep.mubr.bf16.mxu0 0
        %443 = vmatmul.mubr.bf16.gmra.mxu0 %v363
        %v444 = vpop.f32.mrf.mxu0
        %v445 = vadd.f32 0.0, %v444
        %v446 = vpop.f32.mrf.mxu0
        %v447 = vadd.f32 0.0, %v446
        %v448 = vpop.f32.mrf.mxu0
        %v449 = vadd.f32 0.0, %v448
        %v450 = vpop.f32.mrf.mxu0
        %v451 = vadd.f32 0.0, %v450
        %452 = vmatprep.mubr.bf16.mxu0 0
        %453 = vmatmul.mubr.bf16.gmra.mxu0 %v366
        %v454 = vpop.f32.mrf.mxu0
        %v455 = vadd.f32 0.0, %v454
        %v456 = vpop.f32.mrf.mxu0
        %v457 = vadd.f32 0.0, %v456
        %v458 = vpop.f32.mrf.mxu0
        %v459 = vadd.f32 0.0, %v458
        %v460 = vpop.f32.mrf.mxu0
        %v461 = vadd.f32 0.0, %v460
        %462 = vmatprep.mubr.bf16.mxu0 0
        %463 = vmatmul.mubr.bf16.gmra.mxu0 %v369
        %v464 = vpop.f32.mrf.mxu0
        %v465 = vadd.f32 0.0, %v464
        %v466 = vpop.f32.mrf.mxu0
        %v467 = vadd.f32 0.0, %v466
        %v468 = vpop.f32.mrf.mxu0
        %v469 = vpop.f32.mrf.mxu0
        %470 = vdwg.mxu0
        %471 = vmatprep.subr.bf16.mxu0 0
        %472 = vmatpush1.bf16.msra.mxu0 0
        %473 = vmatprep.subr.bf16.mxu0 0
        %474 = vmatpush1.bf16.msra.mxu0 0
        %475 = vmatprep.subr.bf16.mxu0 0
        %476 = vmatpush1.bf16.msra.mxu0 0
        %477 = vmatprep.subr.bf16.mxu0 0
        %478 = vmatpush1.bf16.msra.mxu0 0
        %479 = vmatprep.subr.bf16.mxu0 0
        %480 = vmatpush1.bf16.msra.mxu0 0
        %481 = vmatprep.subr.bf16.mxu0 0
        %482 = vmatpush1.bf16.msra.mxu0 0
        %483 = vmatprep.subr.bf16.mxu0 0
        %484 = vmatpush1.bf16.msra.mxu0 0
        %485 = vmatprep.subr.bf16.mxu0 %v382
        %486 = vmatpush1.bf16.msra.mxu0 %v379
        %487 = vmatprep.subr.bf16.mxu0 0
        %488 = vmatpush2.bf16.msra.mxu0 0
        %489 = vmatprep.subr.bf16.mxu0 0
        %490 = vmatpush2.bf16.msra.mxu0 0
        %491 = vmatprep.subr.bf16.mxu0 0
        %492 = vmatpush2.bf16.msra.mxu0 0
        %493 = vmatprep.subr.bf16.mxu0 0
        %494 = vmatpush2.bf16.msra.mxu0 0
        %495 = vmatprep.subr.bf16.mxu0 0
        %496 = vmatpush2.bf16.msra.mxu0 0
        %497 = vmatprep.subr.bf16.mxu0 0
        %498 = vmatpush2.bf16.msra.mxu0 0
        %499 = vmatprep.subr.bf16.mxu0 0
        %500 = vmatpush2.bf16.msra.mxu0 0
        %501 = vmatprep.subr.bf16.mxu0 0
        %502 = vmatpush2.bf16.msra.mxu0 0
        %503 = vmatprep.mubr.bf16.mxu0 0
        %504 = vmatmul.mubr.bf16.gmra.mxu0 %v357
        %v505 = vpop.f32.mrf.mxu0
        %v506 = vadd.f32 0.0, %v505
        %v507 = vpop.f32.mrf.mxu0
        %v508 = vadd.f32 0.0, %v507
        %v509 = vpop.f32.mrf.mxu0
        %v510 = vadd.f32 0.0, %v509
        %v511 = vpop.f32.mrf.mxu0
        %v512 = vadd.f32 0.0, %v511
        %513 = vmatprep.mubr.bf16.mxu0 0
        %514 = vmatmul.mubr.bf16.gmra.mxu0 %v360
        %v515 = vpop.f32.mrf.mxu0
        %v516 = vadd.f32 0.0, %v515
        %v517 = vpop.f32.mrf.mxu0
        %v518 = vadd.f32 0.0, %v517
        %v519 = vpop.f32.mrf.mxu0
        %v520 = vadd.f32 0.0, %v519
        %v521 = vpop.f32.mrf.mxu0
        %v522 = vadd.f32 0.0, %v521
        %523 = vmatprep.mubr.bf16.mxu0 0
        %524 = vmatmul.mubr.bf16.gmra.mxu0 %v363
        %v525 = vpop.f32.mrf.mxu0
        %v526 = vadd.f32 0.0, %v525
        %v527 = vpop.f32.mrf.mxu0
        %v528 = vadd.f32 0.0, %v527
        %v529 = vpop.f32.mrf.mxu0
        %v530 = vadd.f32 0.0, %v529
        %v531 = vpop.f32.mrf.mxu0
        %v532 = vadd.f32 0.0, %v531
        %533 = vmatprep.mubr.bf16.mxu0 0
        %534 = vmatmul.mubr.bf16.gmra.mxu0 %v366
        %v535 = vpop.f32.mrf.mxu0
        %v536 = vadd.f32 0.0, %v535
        %v537 = vpop.f32.mrf.mxu0
        %v538 = vadd.f32 0.0, %v537
        %v539 = vpop.f32.mrf.mxu0
        %v540 = vadd.f32 0.0, %v539
        %v541 = vpop.f32.mrf.mxu0
        %v542 = vadd.f32 0.0, %v541
        %543 = vmatprep.mubr.bf16.mxu0 0
        %544 = vmatmul.mubr.bf16.gmra.mxu0 %v369
        %v545 = vpop.f32.mrf.mxu0
        %v546 = vadd.f32 0.0, %v545
        %v547 = vpop.f32.mrf.mxu0
        %v548 = vadd.f32 0.0, %v547
        %v549 = vpop.f32.mrf.mxu0
        %v550 = vpop.f32.mrf.mxu0
        %551 = vdwg.mxu0
        %552 = vmatprep.subr.bf16.mxu0 0
        %553 = vmatpush1.bf16.msra.mxu0 0
        %554 = vmatprep.subr.bf16.mxu0 0
        %555 = vmatpush1.bf16.msra.mxu0 0
        %556 = vmatprep.subr.bf16.mxu0 0
        %557 = vmatpush1.bf16.msra.mxu0 0
        %558 = vmatprep.subr.bf16.mxu0 0
        %559 = vmatpush1.bf16.msra.mxu0 0
        %560 = vmatprep.subr.bf16.mxu0 0
        %561 = vmatpush1.bf16.msra.mxu0 0
        %562 = vmatprep.subr.bf16.mxu0 0
        %563 = vmatpush1.bf16.msra.mxu0 0
        %564 = vmatprep.subr.bf16.mxu0 0
        %565 = vmatpush1.bf16.msra.mxu0 0
        %566 = vmatprep.subr.bf16.mxu0 %v388
        %567 = vmatpush1.bf16.msra.mxu0 %v385
        %568 = vmatprep.subr.bf16.mxu0 0
        %569 = vmatpush2.bf16.msra.mxu0 0
        %570 = vmatprep.subr.bf16.mxu0 0
        %571 = vmatpush2.bf16.msra.mxu0 0
        %572 = vmatprep.subr.bf16.mxu0 0
        %573 = vmatpush2.bf16.msra.mxu0 0
        %574 = vmatprep.subr.bf16.mxu0 0
        %575 = vmatpush2.bf16.msra.mxu0 0
        %576 = vmatprep.subr.bf16.mxu0 0
        %577 = vmatpush2.bf16.msra.mxu0 0
        %578 = vmatprep.subr.bf16.mxu0 0
        %579 = vmatpush2.bf16.msra.mxu0 0
        %580 = vmatprep.subr.bf16.mxu0 0
        %581 = vmatpush2.bf16.msra.mxu0 0
        %582 = vmatprep.subr.bf16.mxu0 0
        %583 = vmatpush2.bf16.msra.mxu0 0
        %584 = vmatprep.mubr.bf16.mxu0 0
        %585 = vmatmul.mubr.bf16.gmra.mxu0 %v357
        %v586 = vpop.f32.mrf.mxu0
        %v587 = vadd.f32 0.0, %v586
        %v588 = vpop.f32.mrf.mxu0
        %v589 = vadd.f32 0.0, %v588
        %v590 = vpop.f32.mrf.mxu0
        %v591 = vadd.f32 0.0, %v590
        %v592 = vpop.f32.mrf.mxu0
        %v593 = vadd.f32 0.0, %v592
        %594 = vmatprep.mubr.bf16.mxu0 0
        %595 = vmatmul.mubr.bf16.gmra.mxu0 %v360
        %v596 = vpop.f32.mrf.mxu0
        %v597 = vadd.f32 0.0, %v596
        %v598 = vpop.f32.mrf.mxu0
        %v599 = vadd.f32 0.0, %v598
        %v600 = vpop.f32.mrf.mxu0
        %v601 = vadd.f32 0.0, %v600
        %v602 = vpop.f32.mrf.mxu0
        %v603 = vadd.f32 0.0, %v602
        %604 = vmatprep.mubr.bf16.mxu0 0
        %605 = vmatmul.mubr.bf16.gmra.mxu0 %v363
        %v606 = vpop.f32.mrf.mxu0
        %v607 = vadd.f32 0.0, %v606
        %v608 = vpop.f32.mrf.mxu0
        %v609 = vadd.f32 0.0, %v608
        %v610 = vpop.f32.mrf.mxu0
        %v611 = vadd.f32 0.0, %v610
        %v612 = vpop.f32.mrf.mxu0
        %v613 = vadd.f32 0.0, %v612
        %614 = vmatprep.mubr.bf16.mxu0 0
        %615 = vmatmul.mubr.bf16.gmra.mxu0 %v366
        %v616 = vpop.f32.mrf.mxu0
        %v617 = vadd.f32 0.0, %v616
        %v618 = vpop.f32.mrf.mxu0
        %v619 = vadd.f32 0.0, %v618
        %v620 = vpop.f32.mrf.mxu0
        %v621 = vadd.f32 0.0, %v620
        %v622 = vpop.f32.mrf.mxu0
        %v623 = vadd.f32 0.0, %v622
        %624 = vmatprep.mubr.bf16.mxu0 0
        %625 = vmatmul.mubr.bf16.gmra.mxu0 %v369
        %v626 = vpop.f32.mrf.mxu0
        %v627 = vadd.f32 0.0, %v626
        %v628 = vpop.f32.mrf.mxu0
        %v629 = vadd.f32 0.0, %v628
        %v630 = vpop.f32.mrf.mxu0
        %v631 = vpop.f32.mrf.mxu0
        %632 = vdwg.mxu0
        %633 = vrot.lane.b32.xlu0 %v425, 19
        %v634 = vpop.permute.xlu0 %633
        %635 = vrot.lane.b32.xlu0 %v427, 19
        %v636 = vpop.permute.xlu0 %635
        %637 = vrot.lane.b32.xlu0 %v506, 19
        %v638 = vpop.permute.xlu0 %637
        %639 = vrot.lane.b32.xlu0 %v508, 19
        %v640 = vpop.permute.xlu0 %639
        %641 = vrot.lane.b32.xlu0 %v587, 19
        %v642 = vpop.permute.xlu0 %641
        %643 = vrot.lane.b32.xlu0 %v589, 19
        %v644 = vpop.permute.xlu0 %643
        %v645 = vlaneseq
        %v646 = vand.u32 %v645, 127
        %vm647 = vcmp.lt.s32.totalorder %v646, 19
        %v648 = vsel %vm647, %v642, %v644
        %v649 = vsel %vm647, %v640, %v642
        %v650 = vsel %vm647, %v638, %v640
        %v651 = vsel %vm647, %v636, %v638
        %v652 = vsel %vm647, %v634, %v636
        %v653 = vsel %vm647, %v644, %v634
        %v654 = vadd.f32 %v653, 0.0
        %v655 = vadd.f32 %v652, 0.0
        %v656 = vadd.f32 %v651, 0.0
        %v657 = vadd.f32 %v650, 0.0
        %v658 = vadd.f32 %v649, 0.0
        %v659 = vadd.f32 %v648, 0.0
        %660 = vrot.lane.b32.xlu0 %v429, 18
        %v661 = vpop.permute.xlu0 %660
        %662 = vrot.lane.b32.xlu0 %v431, 18
        %v663 = vpop.permute.xlu0 %662
        %664 = vrot.lane.b32.xlu0 %v510, 18
        %v665 = vpop.permute.xlu0 %664
        %666 = vrot.lane.b32.xlu0 %v512, 18
        %v667 = vpop.permute.xlu0 %666
        %668 = vrot.lane.b32.xlu0 %v591, 18
        %v669 = vpop.permute.xlu0 %668
        %670 = vrot.lane.b32.xlu0 %v593, 18
        %v671 = vpop.permute.xlu0 %670
        %vm672 = vcmp.lt.s32.totalorder %v646, 18
        %v673 = vsel %vm672, %v669, %v671
        %v674 = vsel %vm672, %v667, %v669
        %v675 = vsel %vm672, %v665, %v667
        %v676 = vsel %vm672, %v663, %v665
        %v677 = vsel %vm672, %v661, %v663
        %v678 = vsel %vm672, %v671, %v661
        %v679 = vadd.f32 %v654, %v678
        %v680 = vadd.f32 %v655, %v677
        %v681 = vadd.f32 %v656, %v676
        %v682 = vadd.f32 %v657, %v675
        %v683 = vadd.f32 %v658, %v674
        %v684 = vadd.f32 %v659, %v673
        %685 = vrot.lane.b32.xlu0 %v435, 17
        %v686 = vpop.permute.xlu0 %685
        %687 = vrot.lane.b32.xlu0 %v437, 17
        %v688 = vpop.permute.xlu0 %687
        %689 = vrot.lane.b32.xlu0 %v516, 17
        %v690 = vpop.permute.xlu0 %689
        %691 = vrot.lane.b32.xlu0 %v518, 17
        %v692 = vpop.permute.xlu0 %691
        %693 = vrot.lane.b32.xlu0 %v597, 17
        %v694 = vpop.permute.xlu0 %693
        %695 = vrot.lane.b32.xlu0 %v599, 17
        %v696 = vpop.permute.xlu0 %695
        %vm697 = vcmp.lt.s32.totalorder %v646, 17
        %v698 = vsel %vm697, %v694, %v696
        %v699 = vsel %vm697, %v692, %v694
        %v700 = vsel %vm697, %v690, %v692
        %v701 = vsel %vm697, %v688, %v690
        %v702 = vsel %vm697, %v686, %v688
        %v703 = vsel %vm697, %v696, %v686
        %v704 = vadd.f32 %v679, %v703
        %v705 = vadd.f32 %v680, %v702
        %v706 = vadd.f32 %v681, %v701
        %v707 = vadd.f32 %v682, %v700
        %v708 = vadd.f32 %v683, %v699
        %v709 = vadd.f32 %v684, %v698
        %710 = vrot.lane.b32.xlu0 %v439, 1
        %v711 = vpop.permute.xlu0 %710
        %712 = vrot.lane.b32.xlu0 %v441, 1
        %v713 = vpop.permute.xlu0 %712
        %714 = vrot.lane.b32.xlu0 %v520, 1
        %v715 = vpop.permute.xlu0 %714
        %716 = vrot.lane.b32.xlu0 %v522, 1
        %v717 = vpop.permute.xlu0 %716
        %718 = vrot.lane.b32.xlu0 %v601, 1
        %v719 = vpop.permute.xlu0 %718
        %720 = vrot.lane.b32.xlu0 %v603, 1
        %v721 = vpop.permute.xlu0 %720
        %vm722 = vcmp.lt.s32.totalorder %v646, 1
        %v723 = vsel %vm722, %v719, %v721
        %v724 = vsel %vm722, %v717, %v719
        %v725 = vsel %vm722, %v715, %v717
        %v726 = vsel %vm722, %v713, %v715
        %v727 = vsel %vm722, %v711, %v713
        %v728 = vsel %vm722, %v721, %v711
        %v729 = vadd.f32 %v704, %v728
        %v730 = vadd.f32 %v705, %v727
        %v731 = vadd.f32 %v706, %v726
        %v732 = vadd.f32 %v707, %v725
        %v733 = vadd.f32 %v708, %v724
        %v734 = vadd.f32 %v709, %v723
        %v735 = vadd.f32 %v729, %v445
        %v736 = vadd.f32 %v730, %v447
        %v737 = vadd.f32 %v731, %v526
        %v738 = vadd.f32 %v732, %v528
        %v739 = vadd.f32 %v733, %v607
        %v740 = vadd.f32 %v734, %v609
        %741 = vrot.lane.b32.xlu0 %v449, 127
        %v742 = vpop.permute.xlu0 %741
        %743 = vrot.lane.b32.xlu0 %v451, 127
        %v744 = vpop.permute.xlu0 %743
        %745 = vrot.lane.b32.xlu0 %v530, 127
        %v746 = vpop.permute.xlu0 %745
        %747 = vrot.lane.b32.xlu0 %v532, 127
        %v748 = vpop.permute.xlu0 %747
        %749 = vrot.lane.b32.xlu0 %v611, 127
        %v750 = vpop.permute.xlu0 %749
        %751 = vrot.lane.b32.xlu0 %v613, 127
        %v752 = vpop.permute.xlu0 %751
        %vm753 = vcmp.lt.s32.totalorder %v646, 127
        %v754 = vsel %vm753, %v750, %v752
        %v755 = vsel %vm753, %v748, %v750
        %v756 = vsel %vm753, %v746, %v748
        %v757 = vsel %vm753, %v744, %v746
        %v758 = vsel %vm753, %v742, %v744
        %v759 = vsel %vm753, %v752, %v742
        %v760 = vadd.f32 %v735, %v758
        %v761 = vadd.f32 %v736, %v757
        %v762 = vadd.f32 %v737, %v756
        %v763 = vadd.f32 %v738, %v755
        %v764 = vadd.f32 %v739, %v754
        %v765 = vadd.f32 %v740, %v759
        %766 = vrot.lane.b32.xlu0 %v455, 111
        %v767 = vpop.permute.xlu0 %766
        %768 = vrot.lane.b32.xlu0 %v457, 111
        %v769 = vpop.permute.xlu0 %768
        %770 = vrot.lane.b32.xlu0 %v536, 111
        %v771 = vpop.permute.xlu0 %770
        %772 = vrot.lane.b32.xlu0 %v538, 111
        %v773 = vpop.permute.xlu0 %772
        %774 = vrot.lane.b32.xlu0 %v617, 111
        %v775 = vpop.permute.xlu0 %774
        %776 = vrot.lane.b32.xlu0 %v619, 111
        %v777 = vpop.permute.xlu0 %776
        %vm778 = vcmp.lt.s32.totalorder %v646, 111
        %v779 = vsel %vm778, %v775, %v777
        %v780 = vsel %vm778, %v773, %v775
        %v781 = vsel %vm778, %v771, %v773
        %v782 = vsel %vm778, %v769, %v771
        %v783 = vsel %vm778, %v767, %v769
        %v784 = vsel %vm778, %v777, %v767
        %v785 = vadd.f32 %v760, %v783
        %v786 = vadd.f32 %v761, %v782
        %v787 = vadd.f32 %v762, %v781
        %v788 = vadd.f32 %v763, %v780
        %v789 = vadd.f32 %v764, %v779
        %v790 = vadd.f32 %v765, %v784
        %791 = vrot.lane.b32.xlu0 %v459, 110
        %v792 = vpop.permute.xlu0 %791
        %793 = vrot.lane.b32.xlu0 %v461, 110
        %v794 = vpop.permute.xlu0 %793
        %795 = vrot.lane.b32.xlu0 %v540, 110
        %v796 = vpop.permute.xlu0 %795
        %797 = vrot.lane.b32.xlu0 %v542, 110
        %v798 = vpop.permute.xlu0 %797
        %799 = vrot.lane.b32.xlu0 %v621, 110
        %v800 = vpop.permute.xlu0 %799
        %801 = vrot.lane.b32.xlu0 %v623, 110
        %v802 = vpop.permute.xlu0 %801
        %vm803 = vcmp.lt.s32.totalorder %v646, 110
        %v804 = vsel %vm803, %v800, %v802
        %v805 = vsel %vm803, %v798, %v800
        %v806 = vsel %vm803, %v796, %v798
        %v807 = vsel %vm803, %v794, %v796
        %v808 = vsel %vm803, %v792, %v794
        %v809 = vsel %vm803, %v802, %v792
        %v810 = vadd.f32 %v785, %v808
        %v811 = vadd.f32 %v786, %v807
        %v812 = vadd.f32 %v787, %v806
        %v813 = vadd.f32 %v788, %v805
        %v814 = vadd.f32 %v789, %v804
        %v815 = vadd.f32 %v790, %v809
        %816 = vrot.lane.b32.xlu0 %v465, 109
        %v817 = vpop.permute.xlu0 %816
        %818 = vrot.lane.b32.xlu0 %v467, 109
        %v819 = vpop.permute.xlu0 %818
        %820 = vrot.lane.b32.xlu0 %v546, 109
        %v821 = vpop.permute.xlu0 %820
        %822 = vrot.lane.b32.xlu0 %v548, 109
        %v823 = vpop.permute.xlu0 %822
        %824 = vrot.lane.b32.xlu0 %v627, 109
        %v825 = vpop.permute.xlu0 %824
        %826 = vrot.lane.b32.xlu0 %v629, 109
        %v827 = vpop.permute.xlu0 %826
        %vm828 = vcmp.lt.s32.totalorder %v646, 109
        %v829 = vsel %vm828, %v825, %v827
        %v830 = vsel %vm828, %v823, %v825
        %v831 = vsel %vm828, %v821, %v823
        %v832 = vsel %vm828, %v819, %v821
        %v833 = vsel %vm828, %v817, %v819
        %v834 = vsel %vm828, %v827, %v817
        %v835 = vadd.f32 %v810, %v833
        %v836 = vadd.f32 %v811, %v832
        %v837 = vadd.f32 %v812, %v831
        %v838 = vadd.f32 %v813, %v830
        %v839 = vadd.f32 %v814, %v829
        %v840 = vadd.f32 %v815, %v834
        %s841 = smul.u32 %s21, 6
        %s842 = smul.addr %s841, 8
        %s843 = scalar_lea.vmem [#allocation2], %s842
        %844 = vst [vmem:[%s843] sm:$0xff] %v835
        %845 = vst [vmem:[%s843 + $0x8] sm:$0xff] %v836
        %846 = vst [vmem:[%s843 + $0x10] sm:$0xff] %v837
        %847 = vst [vmem:[%s843 + $0x18] sm:$0xff] %v838
        %848 = vst [vmem:[%s843 + $0x20] sm:$0xff] %v839
        %849 = vst [vmem:[%s843 + $0x28] sm:$0xff] %v840
        %v850 = vld [vmem:[%s270] sm:$0x3f]
        %v852 = vlaneseq
        %v853 = vshrl.u32 %v852, 7
        %v854 = vsub.s32 0, %v853
        %v855 = vrot.slane %v850, %v854
        %v856 = vlaneseq
        %v857 = vshrl.u32 %v856, 7
        %v858 = vsub.s32 1, %v857
        %v859 = vrot.slane %v850, %v858
        %v860 = vlaneseq
        %v861 = vshrl.u32 %v860, 7
        %v862 = vsub.s32 2, %v861
        %v863 = vrot.slane %v850, %v862
        %v864 = vlaneseq
        %v865 = vshrl.u32 %v864, 7
        %v866 = vsub.s32 3, %v865
        %v867 = vrot.slane %v850, %v866
        %v868 = vlaneseq
        %v869 = vshrl.u32 %v868, 7
        %v870 = vsub.s32 4, %v869
        %v871 = vrot.slane %v850, %v870
        %v872 = vlaneseq
        %v873 = vshrl.u32 %v872, 7
        %v874 = vsub.s32 5, %v873
        %v875 = vrot.slane %v850, %v874
        %v882 = vmul.f32 %v835, %v855
        %v883 = vmul.f32 %v836, %v859
        %v884 = vmul.f32 %v837, %v863
        %v885 = vmul.f32 %v838, %v867
        %v886 = vmul.f32 %v839, %v871
        %v887 = vmul.f32 %v840, %v875
        %v888 = vld [vmem:[#allocation3] sm:$0xff]
        %v889 = vadd.f32 %v882, %v883
        %v890 = vadd.f32 %v889, %v884
        %v891 = vadd.f32 %v890, %v885
        %v892 = vadd.f32 %v891, %v886
        %v893 = vadd.f32 %v892, %v887
        %894 = vadd.xlane.f32.xlu0 %v893
        %v895 = vpop.xlane.xlu0 %894
        %v896 = vadd.f32 %v888, %v895
        %vm897 = vcmask 7168
        %898 = vst.msk [vmem:[#allocation3] sm:$0xff] %vm897, %v896
        %v899 = vld [vmem:[#allocation4] sm:$0xff]
        %v900 = vmul.f32 %v882, %v882
        %v901 = vmul.f32 %v883, %v883
        %v902 = vmul.f32 %v884, %v884
        %v903 = vmul.f32 %v885, %v885
        %v904 = vmul.f32 %v886, %v886
        %v905 = vmul.f32 %v887, %v887
        %v906 = vadd.f32 %v900, %v901
        %v907 = vadd.f32 %v906, %v902
        %v908 = vadd.f32 %v907, %v903
        %v909 = vadd.f32 %v908, %v904
        %v910 = vadd.f32 %v909, %v905
        %911 = vadd.xlane.f32.xlu0 %v910
        %v912 = vpop.xlane.xlu0 %911
        %v913 = vadd.f32 %v899, %v912
        %914 = vst.msk [vmem:[#allocation4] sm:$0xff] %vm897, %v913
      $region48: #{netd_forward.5} parent=39 // pred_fallthru
        _
      %p915 = scmp.eq.s32.totalorder %s20, 1
      %p916 = pnand %p915, %p294
      %p917 = pneg %p916
      // Predicated region
      $region49: #{netd_forward.5} parent=39 // pred_check
        _
      $region50: #{netd_forward.5} parent=39 // pred_check_branch
        %919 = sbr.rel (%p916) target = $region52
      $region51: #{netd_forward.5} parent=39 // pred_region
        %v920 = vld [vmem:[#allocation3] sm:$0xff]
        %v921 = vmul.f32 %v920, 0.001953125
        %v922 = vld [vmem:[#allocation4] sm:$0xff]
        %v923 = vmul.f32 %v922, 0.001953125
        %v924 = vmul.f32 %v921, %v921
        %v925 = vsub.f32 %v923, %v924
        %v926 = vmax.f32 %v925, 0.0
        %v927 = vld [vmem:[%s1] sm:$0xff]
        %v928 = vadd.f32 %v926, 1e-05
        %v929 = vrsqrt.pop %v928
        %v930 = vmul.f32 %v927, %v929
        %vm931 = vcmask 7168
        %932 = vst.msk [vmem:[#allocation5] sm:$0xff] %vm931, %v930
        %v933 = vld [vmem:[%s2] sm:$0xff]
        %v934 = vmul.f32 %v921, %v930
        %v935 = vsub.f32 %v933, %v934
        %936 = vst.msk [vmem:[#allocation6] sm:$0xff] %vm931, %v935
      $region52: #{netd_forward.5} parent=39 // pred_fallthru
        _
      // Predicated region
      $region53: #{netd_forward.5} parent=39 // pred_check
        %p937 = pneg %p915
      $region54: #{netd_forward.5} parent=39 // pred_check_branch
        %939 = sbr.rel (%p937) target = $region56
      $region55: #{netd_forward.5} parent=39 // pred_region
        %s940 = smul.u32 %s21, 6
        %s941 = smul.addr %s940, 8
        %s942 = scalar_lea.vmem [#allocation2], %s941
        %v943 = vld [vmem:[%s942] sm:$0xff]
        %v944 = vld [vmem:[%s942 + $0x8] sm:$0xff]
        %v945 = vld [vmem:[%s942 + $0x10] sm:$0xff]
        %v946 = vld [vmem:[%s942 + $0x18] sm:$0xff]
        %v947 = vld [vmem:[%s942 + $0x20] sm:$0xff]
        %v948 = vld [vmem:[%s942 + $0x28] sm:$0xff]
        %v949 = vld [vmem:[#allocation5] sm:$0xff]
        %951 = vset.pattern.permute.xlu0 0
        %952 = vperm.xlu0 %951, %v949
        %v953 = vpop.permute.xlu0 %952
        %v955 = vmul.f32 %v943, %v953
        %v956 = vmul.f32 %v944, %v953
        %v957 = vmul.f32 %v945, %v953
        %v958 = vmul.f32 %v946, %v953
        %v959 = vmul.f32 %v947, %v953
        %v960 = vmul.f32 %v948, %v953
        %v961 = vld [vmem:[#allocation6] sm:$0xff]
        %963 = vset.pattern.permute.xlu0 0
        %964 = vperm.xlu0 %963, %v961
        %v965 = vpop.permute.xlu0 %964
        %v967 = vadd.f32 %v955, %v965
        %v968 = vadd.f32 %v956, %v965
        %v969 = vadd.f32 %v957, %v965
        %v970 = vadd.f32 %v958, %v965
        %v971 = vadd.f32 %v959, %v965
        %v972 = vadd.f32 %v960, %v965
        %vm973 = vcmp.gt.f32.partialorder %v967, 0.0
        %vm974 = vcmp.gt.f32.partialorder %v968, 0.0
        %vm975 = vcmp.gt.f32.partialorder %v969, 0.0
        %vm976 = vcmp.gt.f32.partialorder %v970, 0.0
        %vm977 = vcmp.gt.f32.partialorder %v971, 0.0
        %vm978 = vcmp.gt.f32.partialorder %v972, 0.0
        %v979 = vmul.f32 %v967, 0.2
        %v980 = vmul.f32 %v968, 0.2
        %v981 = vmul.f32 %v969, 0.2
        %v982 = vmul.f32 %v970, 0.2
        %v983 = vmul.f32 %v971, 0.2
        %v984 = vmul.f32 %v972, 0.2
        %v985 = vsel %vm973, %v967, %v979
        %v986 = vsel %vm974, %v968, %v980
        %v987 = vsel %vm975, %v969, %v981
        %v988 = vsel %vm976, %v970, %v982
        %v989 = vsel %vm977, %v971, %v983
        %v990 = vsel %vm978, %v972, %v984
        %v991 = vpack.c.bf16 %v985, %v985
        %v992 = vpack.c.bf16 %v986, %v986
        %v993 = vpack.c.bf16 %v987, %v987
        %v994 = vpack.c.bf16 %v988, %v988
        %v995 = vpack.c.bf16 %v989, %v989
        %v996 = vpack.c.bf16 %v990, %v990
        %v1003 = vunpack.c.l.b16 %v991
        %v1004 = vunpack.c.l.b16 %v992
        %v1005 = vunpack.c.l.b16 %v993
        %v1006 = vunpack.c.l.b16 %v994
        %v1007 = vunpack.c.l.b16 %v995
        %v1008 = vunpack.c.l.b16 %v996
        %v1009 = vpack.c.b16 %v1004, %v1003
        %v1010 = vpack.c.b16 %v1006, %v1005
        %v1011 = vpack.c.b16 %v1008, %v1007
        %1015 = vst [vmem:[%s289] sm:$0xff] %v1009
        %1016 = vst [vmem:[%s289 + $0x8] sm:$0xff] %v1010
        %1017 = vst [vmem:[%s289 + $0x10] sm:$0xff] %v1011
      $region56: #{netd_forward.5} parent=39 // pred_fallthru
        _
      %s1018 = smul.u32 %s20, %s21
      %s1019 = smul.u32 6, %s1018
      %p1020 = scmp.lt.s32.totalorder %s1019, 5
      %s1021 = scalar_select %p1020, %s1019, 5
      %s1022 = smul.addr %s1021, 4
      %s1023 = scalar_lea.vmem %s5, %s1022
      // Predicated region
      $region57: #{netd_forward.5} parent=39 // pred_check
        %p1024 = pneg %p171
      $region58: #{netd_forward.5} parent=39 // pred_check_branch
        %1026 = sbr.rel (%p1024) target = $region60
      $region59: #{netd_forward.5} parent=39 // pred_region
        %s1027 = smul.u32 %s20, %s21
        %s1028 = smul.u32 6, %s1027
      $region60: #{netd_forward.5} parent=39 // pred_fallthru
        _
    $region40: #{netd_forward.5} parent=5 // pred_fallthru
      _
    %p1029 = scmp.le.s32.totalorder 2, %s11
    // Predicated region
    $region61: #{netd_forward.5} parent=5 // pred_check
      %p1030 = pneg %p1029
    $region62: #{netd_forward.5} parent=5 // pred_check_branch
      %1032 = sbr.rel (%p1030) target = $region64
    $region63: #{netd_forward.5} parent=5 // pred_region
      %s1033 = ssub.s32 %s11, 2
      // Predicated region
      $region65: #{netd_forward.5} parent=63 // pred_check
        %p1034 = pneg %p177
      $region66: #{netd_forward.5} parent=63 // pred_check_branch
        %1036 = sbr.rel (%p1034) target = $region68
      $region67: #{netd_forward.5} parent=63 // pred_region
        %s1037 = smul.u32 %s22, %s23
        %s1038 = smul.u32 6, %s1037
        %p1039 = scmp.lt.s32.totalorder %s1038, 5
        %s1040 = scalar_select %p1039, %s1038, 5
        %s1041 = smul.addr %s1040, 4
        %s1042 = scalar_lea.vmem %s5, %s1041
      $region68: #{netd_forward.5} parent=63 // pred_fallthru
        _
    $region64: #{netd_forward.5} parent=5 // pred_fallthru
      _
  $region6: #{netd_forward.5} parent=0 // loop_footer
    %s15 = sadd.s32 1, %s11
  $region7: #{netd_forward.5} parent=0 // loop_footer_branch
    %10 = sbr.rel target = $region3
  $region8: #{netd_forward.5} parent=0 // loop_exit
    _

// kernel: netd_forward.6
$region0: #{netd_forward.6}
  #allocation0 [shape = 'u32[]', space=smem, size = 0x4, offset = 0x4, fixed_abs, tag = 'smem constant byte address 0x4 - core index']
  #allocation1 [shape = 'u32[144,128]{1,0:T(1,128)}', space=vmem, size = 0x12000, scoped, tag = 'internal scratch']
  #allocation2 [shape = 'f32[1,16,128]{2,1,0:T(8,128)}', space=vmem, size = 0x2000, scoped, tag = 'scratch operand']
  #allocation3 [shape = 'f32[16,1]{1,0:T(8,128)}', space=vmem, size = 0x2000, scoped, tag = 'scratch operand']
  #allocation4 [shape = 'f32[16,1]{1,0:T(8,128)}', space=vmem, size = 0x2000, scoped, tag = 'scratch operand']
  #allocation5 [shape = 'f32[16,1]{1,0:T(8,128)}', space=vmem, size = 0x2000, scoped, tag = 'scratch operand']
  #allocation6 [shape = 'f32[16,1]{1,0:T(8,128)}', space=vmem, size = 0x2000, scoped, tag = 'scratch operand']
  %s0 = inlined_call_operand.vmem [shape: bf16[16,32], index: 0, kind: input, shape index: {}]
  %s1 = inlined_call_operand.vmem [shape: f32[16,1], index: 1, kind: input, shape index: {}]
  %s2 = inlined_call_operand.vmem [shape: f32[16,1], index: 2, kind: input, shape index: {}]
  %s3 = inlined_call_operand.vmem [shape: bf16[32,128], index: 3, kind: input, shape index: {}]
  %s4 = inlined_call_operand.vmem [shape: bf16[16,128], index: 4, kind: output, shape index: {}]
  %s5 = sld [smem:[#allocation0]]
  $region65: #{netd_forward.6} parent=0
    _
  %s7 = ssub.s32 1, %s5
  %s8 = scalar_select 0, %s7, %s5
  loop: start=0, step=1, limit=4
  $region2: #{netd_forward.6} parent=0 // loop_pre_header
    _
  $region3: #{netd_forward.6} parent=0 // loop_header
    %s10 = sphi 0, %s14
    %p11 = scmp.ge.s32.totalorder %s10, 4
    %s17 = sphi 0, %s29
    %s18 = sphi 0, %s25
    %s19 = sphi 0, %s17
    %s20 = sphi 0, %s18
    %s21 = sphi 0, %s19
    %s22 = sphi 0, %s20
    %s30 = sphi 0, %s30
    %s32 = sphi 0, %s30
    %s33 = sphi 0, %s32
    %s47 = sphi 0, %s33
    %s51 = sphi 0, %s51
    %s53 = sphi 0, %s51
    %s54 = sphi 0, %s53
    %s68 = sphi 0, %s54
    %s72 = sphi 0, %s72
    %s74 = sphi 0, %s72
    %s75 = sphi 0, %s74
    %s89 = sphi 0, %s75
    %s99 = sphi 0, %s101
    %s102 = sphi 0, %s99
    %s103 = sphi 0, %s102
    %s119 = sphi 0, %s103
    %s127 = sphi 0, %s129
    %s130 = sphi 0, %s127
    %s131 = sphi 0, %s130
    %s147 = sphi 0, %s131
  $region4: #{netd_forward.6} parent=0 // loop_header_branch
    %13 = sbr.rel (%p11) target = $region8
  $region5: #{netd_forward.6} parent=0 // loop_body
    %s15 = ssub.s32 %s10, 1
    %s16 = ssub.s32 %s10, 2
    %s23 = sadd.s32 1, %s18
    %p24 = scmp.ge.s32.totalorder %s23, 1
    %s25 = scalar_select %p24, 0, %s23
    %s26 = sadd.s32 1, %s17
    %s27 = scalar_select %p24, %s26, %s17
    %p28 = scmp.ge.s32.totalorder %s27, 2
    %s29 = scalar_select %p28, 0, %s27
    %s31 = sadd.s32 %s30, 1
    %p34 = scmp.eq.s32.totalorder %s10, 1
    %p35 = scmp.ne.s32.totalorder %s30, %s32
    %p36 = scmp.eq.s32.totalorder %s10, 0
    %p37 = por %p35, %p36
    %p38 = scmp.ne.s32.totalorder %s30, %s32
    %p39 = scmp.eq.s32.totalorder %s15, 1
    %p40 = por %p38, %p39
    %p41 = scmp.ne.s32.totalorder %s32, %s33
    %p42 = scmp.eq.s32.totalorder %s15, 0
    %p43 = por %p41, %p42
    %p44 = scmp.ne.s32.totalorder %s32, %s33
    %p45 = scmp.eq.s32.totalorder %s16, 1
    %p46 = por %p44, %p45
    %p48 = scmp.ne.s32.totalorder %s33, %s47
    %p49 = scmp.eq.s32.totalorder %s16, 0
    %p50 = por %p48, %p49
    %s52 = sadd.s32 %s51, 1
    %p55 = scmp.eq.s32.totalorder %s10, 1
    %p56 = scmp.ne.s32.totalorder %s51, %s53
    %p57 = scmp.eq.s32.totalorder %s10, 0
    %p58 = por %p56, %p57
    %p59 = scmp.ne.s32.totalorder %s51, %s53
    %p60 = scmp.eq.s32.totalorder %s15, 1
    %p61 = por %p59, %p60
    %p62 = scmp.ne.s32.totalorder %s53, %s54
    %p63 = scmp.eq.s32.totalorder %s15, 0
    %p64 = por %p62, %p63
    %p65 = scmp.ne.s32.totalorder %s53, %s54
    %p66 = scmp.eq.s32.totalorder %s16, 1
    %p67 = por %p65, %p66
    %p69 = scmp.ne.s32.totalorder %s54, %s68
    %p70 = scmp.eq.s32.totalorder %s16, 0
    %p71 = por %p69, %p70
    %s73 = sadd.s32 %s72, 1
    %p76 = scmp.eq.s32.totalorder %s10, 1
    %p77 = scmp.ne.s32.totalorder %s72, %s74
    %p78 = scmp.eq.s32.totalorder %s10, 0
    %p79 = por %p77, %p78
    %p80 = scmp.ne.s32.totalorder %s72, %s74
    %p81 = scmp.eq.s32.totalorder %s15, 1
    %p82 = por %p80, %p81
    %p83 = scmp.ne.s32.totalorder %s74, %s75
    %p84 = scmp.eq.s32.totalorder %s15, 0
    %p85 = por %p83, %p84
    %p86 = scmp.ne.s32.totalorder %s74, %s75
    %p87 = scmp.eq.s32.totalorder %s16, 1
    %p88 = por %p86, %p87
    %p90 = scmp.ne.s32.totalorder %s75, %s89
    %p91 = scmp.eq.s32.totalorder %s16, 0
    %p92 = por %p90, %p91
    %s93 = ssub.s32 1, %s17
    %s94 = smul.u32 %s18, %s93
    %s95 = ssub.s32 1, %s29
    %s96 = smul.u32 %s25, %s95
    %s97 = ssub.s32 %s94, %s96
    %p98 = scmp.eq.s32.totalorder %s97, 0
    %s100 = sadd.s32 %s99, 1
    %s101 = scalar_select %p98, %s99, %s100
    %p104 = pneg %p98
    %p105 = scmp.eq.s32.totalorder %s10, 1
    %p106 = por %p104, %p105
    %p107 = scmp.ne.s32.totalorder %s99, %s102
    %p108 = scmp.eq.s32.totalorder %s10, 0
    %p109 = por %p107, %p108
    %p110 = scmp.ne.s32.totalorder %s99, %s102
    %p111 = scmp.eq.s32.totalorder %s15, 1
    %p112 = por %p110, %p111
    %p113 = scmp.ne.s32.totalorder %s102, %s103
    %p114 = scmp.eq.s32.totalorder %s15, 0
    %p115 = por %p113, %p114
    %p116 = scmp.ne.s32.totalorder %s102, %s103
    %p117 = scmp.eq.s32.totalorder %s16, 1
    %p118 = por %p116, %p117
    %p120 = scmp.ne.s32.totalorder %s103, %s119
    %p121 = scmp.eq.s32.totalorder %s16, 0
    %p122 = por %p120, %p121
    %s123 = smul.u32 %s17, %s18
    %s124 = smul.u32 %s29, %s25
    %s125 = ssub.s32 %s123, %s124
    %p126 = scmp.eq.s32.totalorder %s125, 0
    %s128 = sadd.s32 %s127, 1
    %s129 = scalar_select %p126, %s127, %s128
    %p132 = pneg %p126
    %p133 = scmp.eq.s32.totalorder %s10, 1
    %p134 = por %p132, %p133
    %p135 = scmp.ne.s32.totalorder %s127, %s130
    %p136 = scmp.eq.s32.totalorder %s10, 0
    %p137 = por %p135, %p136
    %p138 = scmp.ne.s32.totalorder %s127, %s130
    %p139 = scmp.eq.s32.totalorder %s15, 1
    %p140 = por %p138, %p139
    %p141 = scmp.ne.s32.totalorder %s130, %s131
    %p142 = scmp.eq.s32.totalorder %s15, 0
    %p143 = por %p141, %p142
    %p144 = scmp.ne.s32.totalorder %s130, %s131
    %p145 = scmp.eq.s32.totalorder %s16, 1
    %p146 = por %p144, %p145
    %p148 = scmp.ne.s32.totalorder %s131, %s147
    %p149 = scmp.eq.s32.totalorder %s16, 0
    %p150 = por %p148, %p149
    %p151 = scmp.le.s32.totalorder 1, %s10
    %p152 = scmp.lt.s32.totalorder %s10, 3
    %p153 = pnand %p151, %p152
    %p154 = pneg %p153
    // Predicated region
    $region9: #{netd_forward.6} parent=5 // pred_check
      _
    $region10: #{netd_forward.6} parent=5 // pred_check_branch
      %156 = sbr.rel (%p153) target = $region12
    $region11: #{netd_forward.6} parent=5 // pred_region
      %s157 = ssub.s32 %s10, 1
      // Predicated region
      $region13: #{netd_forward.6} parent=11 // pred_check
        %p158 = pneg %p43
      $region14: #{netd_forward.6} parent=11 // pred_check_branch
        %160 = sbr.rel (%p158) target = $region16
      $region15: #{netd_forward.6} parent=11 // pred_region
        _
      $region16: #{netd_forward.6} parent=11 // pred_fallthru
        _
      // Predicated region
      $region17: #{netd_forward.6} parent=11 // pred_check
        %p161 = pneg %p64
      $region18: #{netd_forward.6} parent=11 // pred_check_branch
        %163 = sbr.rel (%p161) target = $region20
      $region19: #{netd_forward.6} parent=11 // pred_region
        _
      $region20: #{netd_forward.6} parent=11 // pred_fallthru
        _
      // Predicated region
      $region21: #{netd_forward.6} parent=11 // pred_check
        %p164 = pneg %p85
      $region22: #{netd_forward.6} parent=11 // pred_check_branch
        %166 = sbr.rel (%p164) target = $region24
      $region23: #{netd_forward.6} parent=11 // pred_region
        _
      $region24: #{netd_forward.6} parent=11 // pred_fallthru
        _
    $region12: #{netd_forward.6} parent=5 // pred_fallthru
      _
    %p167 = scmp.lt.s32.totalorder %s10, 2
    // Predicated region
    $region25: #{netd_forward.6} parent=5 // pred_check
      %p168 = pneg %p167
    $region26: #{netd_forward.6} parent=5 // pred_check_branch
      %170 = sbr.rel (%p168) target = $region28
    $region27: #{netd_forward.6} parent=5 // pred_region
      // Predicated region
      $region29: #{netd_forward.6} parent=27 // pred_check
        %p171 = pneg %p109
      $region30: #{netd_forward.6} parent=27 // pred_check_branch
        %173 = sbr.rel (%p171) target = $region32
      $region31: #{netd_forward.6} parent=27 // pred_region
        %s174 = ssub.s32 1, %s17
        %s175 = smul.u32 %s18, %s174
        %p176 = scmp.lt.s32.totalorder %s175, 0
        %s177 = scalar_select %p176, %s175, 0
        %s178 = smul.addr %s177, 4
        %s179 = scalar_lea.vmem %s3, %s178
        %s180 = ssub.s32 1, %s17
        %s181 = smul.u32 %s18, %s180
      $region32: #{netd_forward.6} parent=27 // pred_fallthru
        _
    $region28: #{netd_forward.6} parent=5 // pred_fallthru
      _
    %p182 = scmp.le.s32.totalorder 1, %s10
    %p183 = scmp.lt.s32.totalorder %s10, 3
    %p184 = pnand %p182, %p183
    %p185 = pneg %p184
    // Predicated region
    $region33: #{netd_forward.6} parent=5 // pred_check
      _
    $region34: #{netd_forward.6} parent=5 // pred_check_branch
      %187 = sbr.rel (%p184) target = $region36
    $region35: #{netd_forward.6} parent=5 // pred_region
      %s188 = ssub.s32 %s10, 1
      %p189 = pneg %p43
      %p190 = pneg %p40
      %p191 = pneg %p64
      %p192 = pneg %p61
      %p193 = pneg %p85
      %p194 = pneg %p82
      %s195 = ssub.s32 1, %s19
      %s196 = smul.u32 %s20, %s195
      %p197 = scmp.lt.s32.totalorder %s196, 0
      %s198 = scalar_select %p197, %s196, 0
      %s199 = smul.addr %s198, 4
      %s200 = scalar_lea.vmem %s3, %s199
      %p201 = pneg %p115
      %p202 = pneg %p112
      %p203 = pneg %p143
      %p204 = pneg %p140
      %s205 = smul.u32 %s19, %s20
      %p206 = scmp.lt.s32.totalorder %s205, 0
      %s207 = scalar_select %p206, %s205, 0
      %s208 = smul.addr %s207, 4
      %s209 = scalar_lea.vmem %s4, %s208
      %s210 = ssub.s32 1, %s19
      %s211 = smul.u32 %s20, %s210
      %p212 = scmp.lt.s32.totalorder %s211, 0
      %s213 = scalar_select %p212, %s211, 0
      %s214 = smul.addr %s213, 4
      %s215 = scalar_lea.vmem %s3, %s214
      %s216 = ssub.s32 1, %s19
      %s217 = smul.u32 %s20, %s216
      %s218 = smul.u32 %s19, %s20
      %p219 = scmp.lt.s32.totalorder %s218, 0
      %s220 = scalar_select %p219, %s218, 0
      %s221 = smul.addr %s220, 4
      %s222 = scalar_lea.vmem %s4, %s221
      %s223 = smul.u32 %s19, %s20
      %p225 = scmp.eq.s32.totalorder %s19, 0
      %p226 = scmp.eq.s32.totalorder %s20, 0
      %p227 = pnand %p225, %p226
      %p228 = pneg %p227
      // Predicated region
      $region37: #{netd_forward.6} parent=35 // pred_check
        _
      $region38: #{netd_forward.6} parent=35 // pred_check_branch
        %230 = sbr.rel (%p227) target = $region40
      $region39: #{netd_forward.6} parent=35 // pred_region
        %vm231 = vcmask 7168
        %232 = vst.msk [vmem:[#allocation3] sm:$0xff] %vm231, 0.0
        %233 = vst.msk [vmem:[#allocation3 + $0x8] sm:$0xff] %vm231, 0.0
        %234 = vst.msk [vmem:[#allocation4] sm:$0xff] %vm231, 0.0
        %235 = vst.msk [vmem:[#allocation4 + $0x8] sm:$0xff] %vm231, 0.0
      $region40: #{netd_forward.6} parent=35 // pred_fallthru
        _
      // Predicated region
      $region41: #{netd_forward.6} parent=35 // pred_check
        %p236 = pneg %p225
      $region42: #{netd_forward.6} parent=35 // pred_check_branch
        %238 = sbr.rel (%p236) target = $region44
      $region43: #{netd_forward.6} parent=35 // pred_region
        %v239 = vld [vmem:[%s0] sm:$0xf]
        %v240 = vld [vmem:[%s0 + $0x4] sm:$0xf]
        %v241 = vld [vmem:[%s215] sm:$0xf]
        %v242 = vld [vmem:[%s215 + $0x4] sm:$0xf]
        %v243 = vld [vmem:[%s215 + $0x8] sm:$0xf]
        %v244 = vld [vmem:[%s215 + $0xc] sm:$0xf]
        %v247 = vunpack.c.l.b16 %v239
        %v248 = vunpack.c.l.b16 %v240
        %v249 = vpack.c.b16 %v248, %v247
        %v254 = vunpack.c.l.b16 %v241
        %v255 = vunpack.c.l.b16 %v242
        %v256 = vunpack.c.l.b16 %v243
        %v257 = vunpack.c.l.b16 %v244
        %v258 = vpack.c.b16 %v255, %v254
        %v259 = vpack.c.b16 %v257, %v256
        %vm262 = vcmask 261120
        %v264 = vsel %vm262, %v249, 0
        %266 = vmatprep.subr.bf16.mxu0 0
        %267 = vmatpush1.bf16.msra.mxu0 0
        %268 = vmatprep.subr.bf16.mxu0 0
        %269 = vmatpush1.bf16.msra.mxu0 0
        %270 = vmatprep.subr.bf16.mxu0 0
        %271 = vmatpush1.bf16.msra.mxu0 0
        %272 = vmatprep.subr.bf16.mxu0 0
        %273 = vmatpush1.bf16.msra.mxu0 0
        %274 = vmatprep.subr.bf16.mxu0 0
        %275 = vmatpush1.bf16.msra.mxu0 0
        %276 = vmatprep.subr.bf16.mxu0 0
        %277 = vmatpush1.bf16.msra.mxu0 0
        %278 = vmatprep.subr.bf16.mxu0 0
        %279 = vmatpush1.bf16.msra.mxu0 %v259
        %280 = vmatprep.subr.bf16.mxu0 0
        %281 = vmatpush1.bf16.msra.mxu0 %v258
        %282 = vmatprep.subr.bf16.mxu0 0
        %283 = vmatpush2.bf16.msra.mxu0 0
        %284 = vmatprep.subr.bf16.mxu0 0
        %285 = vmatpush2.bf16.msra.mxu0 0
        %286 = vmatprep.subr.bf16.mxu0 0
        %287 = vmatpush2.bf16.msra.mxu0 0
        %288 = vmatprep.subr.bf16.mxu0 0
        %289 = vmatpush2.bf16.msra.mxu0 0
        %290 = vmatprep.subr.bf16.mxu0 0
        %291 = vmatpush2.bf16.msra.mxu0 0
        %292 = vmatprep.subr.bf16.mxu0 0
        %293 = vmatpush2.bf16.msra.mxu0 0
        %294 = vmatprep.subr.bf16.mxu0 0
        %295 = vmatpush2.bf16.msra.mxu0 0
        %296 = vmatprep.subr.bf16.mxu0 0
        %297 = vmatpush2.bf16.msra.mxu0 0
        %298 = vmatprep.mubr.bf16.mxu0 0
        %299 = vmatmul.mubr.bf16.gmra.mxu0 %v264
        %v300 = vpop.f32.mrf.mxu0
        %v301 = vadd.f32 0.0, %v300
        %v302 = vpop.f32.mrf.mxu0
        %v303 = vpop.f32.mrf.mxu0
        %v304 = vadd.f32 0.0, %v303
        %v305 = vpop.f32.mrf.mxu0
        %306 = vdwg.mxu0
        %s307 = smul.u32 %s20, 16
        %s308 = scalar_lea.vmem [#allocation2], %s307
        %309 = vst [vmem:[%s308] sm:$0xff] %v301
        %310 = vst [vmem:[%s308 + $0x8] sm:$0xff] %v304
        %v311 = vld [vmem:[#allocation3] sm:$0xff]
        %v312 = vld [vmem:[#allocation3 + $0x8] sm:$0xff]
        %313 = vadd.xlane.f32.xlu0 %v301
        %v314 = vpop.xlane.xlu0 %313
        %315 = vadd.xlane.f32.xlu0 %v304
        %v316 = vpop.xlane.xlu0 %315
        %v317 = vadd.f32 %v311, %v314
        %v318 = vadd.f32 %v312, %v316
        %vm319 = vcmask 7168
        %320 = vst.msk [vmem:[#allocation3] sm:$0xff] %vm319, %v317
        %321 = vst.msk [vmem:[#allocation3 + $0x8] sm:$0xff] %vm319, %v318
        %v322 = vld [vmem:[#allocation4] sm:$0xff]
        %v323 = vld [vmem:[#allocation4 + $0x8] sm:$0xff]
        %v324 = vmul.f32 %v301, %v301
        %v325 = vmul.f32 %v304, %v304
        %326 = vadd.xlane.f32.xlu0 %v324
        %v327 = vpop.xlane.xlu0 %326
        %328 = vadd.xlane.f32.xlu0 %v325
        %v329 = vpop.xlane.xlu0 %328
        %v330 = vadd.f32 %v322, %v327
        %v331 = vadd.f32 %v323, %v329
        %332 = vst.msk [vmem:[#allocation4] sm:$0xff] %vm319, %v330
        %333 = vst.msk [vmem:[#allocation4 + $0x8] sm:$0xff] %vm319, %v331
      $region44: #{netd_forward.6} parent=35 // pred_fallthru
        _
      %p334 = scmp.eq.s32.totalorder %s19, 1
      %p335 = pnand %p334, %p226
      %p336 = pneg %p335
      // Predicated region
      $region45: #{netd_forward.6} parent=35 // pred_check
        _
      $region46: #{netd_forward.6} parent=35 // pred_check_branch
        %338 = sbr.rel (%p335) target = $region48
      $region47: #{netd_forward.6} parent=35 // pred_region
        %v339 = vld [vmem:[#allocation3] sm:$0xff]
        %v340 = vld [vmem:[#allocation3 + $0x8] sm:$0xff]
        %v341 = vmul.f32 %v339, 0.0078125
        %v342 = vmul.f32 %v340, 0.0078125
        %v343 = vld [vmem:[#allocation4] sm:$0xff]
        %v344 = vld [vmem:[#allocation4 + $0x8] sm:$0xff]
        %v345 = vmul.f32 %v343, 0.0078125
        %v346 = vmul.f32 %v344, 0.0078125
        %v347 = vmul.f32 %v341, %v341
        %v348 = vmul.f32 %v342, %v342
        %v349 = vsub.f32 %v345, %v347
        %v350 = vsub.f32 %v346, %v348
        %v351 = vmax.f32 %v349, 0.0
        %v352 = vmax.f32 %v350, 0.0
        %v353 = vld [vmem:[%s1] sm:$0xff]
        %v354 = vld [vmem:[%s1 + $0x8] sm:$0xff]
        %v355 = vadd.f32 %v351, 1e-05
        %v356 = vadd.f32 %v352, 1e-05
        %v357 = vrsqrt.pop %v355
        %v358 = vrsqrt.pop %v356
        %v359 = vmul.f32 %v353, %v357
        %v360 = vmul.f32 %v354, %v358
        %vm361 = vcmask 7168
        %362 = vst.msk [vmem:[#allocation5] sm:$0xff] %vm361, %v359
        %363 = vst.msk [vmem:[#allocation5 + $0x8] sm:$0xff] %vm361, %v360
        %v364 = vld [vmem:[%s2] sm:$0xff]
        %v365 = vld [vmem:[%s2 + $0x8] sm:$0xff]
        %v366 = vmul.f32 %v341, %v359
        %v367 = vmul.f32 %v342, %v360
        %v368 = vsub.f32 %v364, %v366
        %v369 = vsub.f32 %v365, %v367
        %370 = vst.msk [vmem:[#allocation6] sm:$0xff] %vm361, %v368
        %371 = vst.msk [vmem:[#allocation6 + $0x8] sm:$0xff] %vm361, %v369
      $region48: #{netd_forward.6} parent=35 // pred_fallthru
        _
      // Predicated region
      $region49: #{netd_forward.6} parent=35 // pred_check
        %p372 = pneg %p334
      $region50: #{netd_forward.6} parent=35 // pred_check_branch
        %374 = sbr.rel (%p372) target = $region52
      $region51: #{netd_forward.6} parent=35 // pred_region
        %s375 = smul.u32 %s20, 16
        %s376 = scalar_lea.vmem [#allocation2], %s375
        %v377 = vld [vmem:[%s376] sm:$0xff]
        %v378 = vld [vmem:[%s376 + $0x8] sm:$0xff]
        %v379 = vld [vmem:[#allocation5] sm:$0xff]
        %v380 = vld [vmem:[#allocation5 + $0x8] sm:$0xff]
        %382 = vset.pattern.permute.xlu0 0
        %383 = vperm.xlu0 %382, %v379
        %v384 = vpop.permute.xlu0 %383
        %387 = vset.pattern.permute.xlu0 0
        %388 = vperm.xlu0 %387, %v380
        %v389 = vpop.permute.xlu0 %388
        %v391 = vmul.f32 %v377, %v384
        %v392 = vmul.f32 %v378, %v389
        %v393 = vld [vmem:[#allocation6] sm:$0xff]
        %v394 = vld [vmem:[#allocation6 + $0x8] sm:$0xff]
        %396 = vset.pattern.permute.xlu0 0
        %397 = vperm.xlu0 %396, %v393
        %v398 = vpop.permute.xlu0 %397
        %401 = vset.pattern.permute.xlu0 0
        %402 = vperm.xlu0 %401, %v394
        %v403 = vpop.permute.xlu0 %402
        %v405 = vadd.f32 %v391, %v398
        %v406 = vadd.f32 %v392, %v403
        %vm407 = vcmp.gt.f32.partialorder %v405, 0.0
        %vm408 = vcmp.gt.f32.partialorder %v406, 0.0
        %v409 = vmul.f32 %v405, 0.2
        %v410 = vmul.f32 %v406, 0.2
        %v411 = vsel %vm407, %v405, %v409
        %v412 = vsel %vm408, %v406, %v410
        %v413 = vpack.c.bf16 %v412, %v411
        %v415 = vunpack.c.l.b16 %v413
        %v416 = vunpack.c.h.b16 %v413
        %v417 = vpack.c.b16 %v415, %v415
        %v418 = vpack.c.b16 %v416, %v416
        %421 = vst [vmem:[%s222] sm:$0xf] %v417
        %422 = vst [vmem:[%s222 + $0x4] sm:$0xf] %v418
      $region52: #{netd_forward.6} parent=35 // pred_fallthru
        _
      %s423 = smul.u32 %s19, %s20
      %p424 = scmp.lt.s32.totalorder %s423, 0
      %s425 = scalar_select %p424, %s423, 0
      %s426 = smul.addr %s425, 4
      %s427 = scalar_lea.vmem %s4, %s426
      // Predicated region
      $region53: #{netd_forward.6} parent=35 // pred_check
        %p428 = pneg %p140
      $region54: #{netd_forward.6} parent=35 // pred_check_branch
        %430 = sbr.rel (%p428) target = $region56
      $region55: #{netd_forward.6} parent=35 // pred_region
        %s431 = smul.u32 %s19, %s20
      $region56: #{netd_forward.6} parent=35 // pred_fallthru
        _
    $region36: #{netd_forward.6} parent=5 // pred_fallthru
      _
    %p432 = scmp.le.s32.totalorder 2, %s10
    // Predicated region
    $region57: #{netd_forward.6} parent=5 // pred_check
      %p433 = pneg %p432
    $region58: #{netd_forward.6} parent=5 // pred_check_branch
      %435 = sbr.rel (%p433) target = $region60
    $region59: #{netd_forward.6} parent=5 // pred_region
      %s436 = ssub.s32 %s10, 2
      // Predicated region
      $region61: #{netd_forward.6} parent=59 // pred_check
        %p437 = pneg %p146
      $region62: #{netd_forward.6} parent=59 // pred_check_branch
        %439 = sbr.rel (%p437) target = $region64
      $region63: #{netd_forward.6} parent=59 // pred_region
        %s440 = smul.u32 %s21, %s22
        %p441 = scmp.lt.s32.totalorder %s440, 0
        %s442 = scalar_select %p441, %s440, 0
        %s443 = smul.addr %s442, 4
        %s444 = scalar_lea.vmem %s4, %s443
      $region64: #{netd_forward.6} parent=59 // pred_fallthru
        _
    $region60: #{netd_forward.6} parent=5 // pred_fallthru
      _
  $region6: #{netd_forward.6} parent=0 // loop_footer
    %s14 = sadd.s32 1, %s10
  $region7: #{netd_forward.6} parent=0 // loop_footer_branch
    %9 = sbr.rel target = $region3
  $region8: #{netd_forward.6} parent=0 // loop_exit
    _

// kernel: netd_forward.7
$region0: #{netd_forward.7}
  #allocation0 [shape = 'u32[]', space=smem, size = 0x4, offset = 0x4, fixed_abs, tag = 'smem constant byte address 0x4 - core index']
  #allocation1 [shape = 'u32[144,128]{1,0:T(1,128)}', space=vmem, size = 0x12000, scoped, tag = 'internal scratch']
  %s0 = inlined_call_operand.vmem [shape: bf16[4,16], index: 0, kind: input, shape index: {}]
  %s1 = inlined_call_operand.vmem [shape: bf16[16,128], index: 1, kind: input, shape index: {}]
  %s2 = inlined_call_operand.vmem [shape: f32[1,128], index: 2, kind: output, shape index: {0}]
  %s3 = inlined_call_operand.vmem [shape: f32[1,128], index: 3, kind: output, shape index: {1}]
  %4 = xla_tuple %s2, %s3
  %s5 = sld [smem:[#allocation0]]
  $region26: #{netd_forward.7} parent=0
    _
  %s7 = ssub.s32 1, %s5
  %s8 = scalar_select 0, %s7, %s5
  // Predicated region
  $region2: #{netd_forward.7} parent=0 // pred_check
    _
  $region3: #{netd_forward.7} parent=0 // pred_check_branch
    %10 = sbr.rel (0) target = $region5
  $region4: #{netd_forward.7} parent=0 // pred_region
    _
  $region5: #{netd_forward.7} parent=0 // pred_fallthru
    _
  // Predicated region
  $region6: #{netd_forward.7} parent=0 // pred_check
    _
  $region7: #{netd_forward.7} parent=0 // pred_check_branch
    %12 = sbr.rel (0) target = $region9
  $region8: #{netd_forward.7} parent=0 // pred_region
    _
  $region9: #{netd_forward.7} parent=0 // pred_fallthru
    _
  %v14 = vld [vmem:[%s0] sm:$0x3]
  %v15 = vld [vmem:[%s1] sm:$0xf]
  %v16 = vld [vmem:[%s1 + $0x4] sm:$0xf]
  %v19 = vunpack.c.l.b16 %v15
  %v20 = vunpack.c.l.b16 %v16
  %v21 = vpack.c.b16 %v20, %v19
  %vm23 = vcmask 130048
  %v25 = vsel %vm23, %v14, 0
  %27 = vmatprep.subr.bf16.mxu0 0
  %28 = vmatpush1.bf16.msra.mxu0 0
  %29 = vmatprep.subr.bf16.mxu0 0
  %30 = vmatpush1.bf16.msra.mxu0 0
  %31 = vmatprep.subr.bf16.mxu0 0
  %32 = vmatpush1.bf16.msra.mxu0 0
  %33 = vmatprep.subr.bf16.mxu0 0
  %34 = vmatpush1.bf16.msra.mxu0 0
  %35 = vmatprep.subr.bf16.mxu0 0
  %36 = vmatpush1.bf16.msra.mxu0 0
  %37 = vmatprep.subr.bf16.mxu0 0
  %38 = vmatpush1.bf16.msra.mxu0 0
  %39 = vmatprep.subr.bf16.mxu0 0
  %40 = vmatpush1.bf16.msra.mxu0 0
  %41 = vmatprep.subr.bf16.mxu0 0
  %42 = vmatpush1.bf16.msra.mxu0 %v21
  %43 = vmatprep.subr.bf16.mxu0 0
  %44 = vmatpush2.bf16.msra.mxu0 0
  %45 = vmatprep.subr.bf16.mxu0 0
  %46 = vmatpush2.bf16.msra.mxu0 0
  %47 = vmatprep.subr.bf16.mxu0 0
  %48 = vmatpush2.bf16.msra.mxu0 0
  %49 = vmatprep.subr.bf16.mxu0 0
  %50 = vmatpush2.bf16.msra.mxu0 0
  %51 = vmatprep.subr.bf16.mxu0 0
  %52 = vmatpush2.bf16.msra.mxu0 0
  %53 = vmatprep.subr.bf16.mxu0 0
  %54 = vmatpush2.bf16.msra.mxu0 0
  %55 = vmatprep.subr.bf16.mxu0 0
  %56 = vmatpush2.bf16.msra.mxu0 0
  %57 = vmatprep.subr.bf16.mxu0 0
  %58 = vmatpush2.bf16.msra.mxu0 0
  %59 = vmatprep.mubr.bf16.mxu0 0
  %60 = vmatmul.mubr.bf16.gmra.mxu0 %v25
  %v61 = vpop.f32.mrf.mxu0
  %v62 = vadd.f32 0.0, %v61
  %v63 = vpop.f32.mrf.mxu0
  %v64 = vpop.f32.mrf.mxu0
  %v65 = vpop.f32.mrf.mxu0
  %66 = vdwg.mxu0
  %v67 = vadd.f32 %v62, 0.0
  %v69 = vrot.slane %v62, 1
  %71 = vrot.lane.b32.xlu0 %v69, 127
  %v72 = vpop.permute.xlu0 %71
  %v73 = vadd.f32 %v67, %v72
  %v74 = vrot.slane %v62, 2
  %76 = vrot.lane.b32.xlu0 %v74, 120
  %v77 = vpop.permute.xlu0 %76
  %v78 = vadd.f32 %v73, %v77
  %v79 = vrot.slane %v62, 3
  %81 = vrot.lane.b32.xlu0 %v79, 119
  %v82 = vpop.permute.xlu0 %81
  %v83 = vadd.f32 %v78, %v82
  %84 = vst [vmem:[%s2] sm:$0x1] %v83
  %v85 = vsub.f32 0.0, %v83
  %v86 = vmul.f32 %v85, 1.442695
  %v87 = vpow.pop %v86
  %v88 = vadd.f32 %v87, 1.0
  %v89 = vrcp.pop %v88
  %v90 = vmax.f32 %v89, 0.0
  %v91 = vmin.f32 %v90, 1.0
  %92 = vst [vmem:[%s3] sm:$0x1] %v91
  // Predicated region
  $region10: #{netd_forward.7} parent=0 // pred_check
    _
  $region11: #{netd_forward.7} parent=0 // pred_check_branch
    %94 = sbr.rel (0) target = $region13
  $region12: #{netd_forward.7} parent=0 // pred_region
    _
  $region13: #{netd_forward.7} parent=0 // pred_fallthru
    _
  // Predicated region
  $region14: #{netd_forward.7} parent=0 // pred_check
    _
  $region15: #{netd_forward.7} parent=0 // pred_check_branch
    %96 = sbr.rel (0) target = $region17
  $region16: #{netd_forward.7} parent=0 // pred_region
    _
  $region17: #{netd_forward.7} parent=0 // pred_fallthru
    _
  // Predicated region
  $region18: #{netd_forward.7} parent=0 // pred_check
    _
  $region19: #{netd_forward.7} parent=0 // pred_check_branch
    %98 = sbr.rel (0) target = $region21
  $region20: #{netd_forward.7} parent=0 // pred_region
    _
  $region21: #{netd_forward.7} parent=0 // pred_fallthru
    _
  // Predicated region
  $region22: #{netd_forward.7} parent=0 // pred_check
    _
  $region23: #{netd_forward.7} parent=0 // pred_check_branch
    %100 = sbr.rel (0) target = $region25
  $region24: #{netd_forward.7} parent=0 // pred_region
    _
  $region25: #{netd_forward.7} parent=0 // pred_fallthru
    _

</llo_original>
